<compile_context>
chip_gen: v7x
topology: tpu7x:2x2x1
jax: 0.10.0
libtpu: 0.0.40
codegen_flags: <defaults>
</compile_context>

<pallas_src>
import functools

import jax
import jax.numpy as jnp
from jax.experimental import pallas as pl
from jax.experimental.pallas import tpu as pltpu

# ---------------- model hyper-parameters (small, synthetic) ----------------
LAYER_SIZE = 2
STACK_SIZE = 2
KERNEL_SIZE = 3
IN_CHANNELS = 4
RES_CHANNELS = 8
EPS = 1e-5                      # nn.BatchNorm1d default eps
MATMUL_DTYPE = jnp.bfloat16     # MXU operand dtype; accumulation stays f32


def build_dilations(layer_size, stack_size):
    return [2 ** l for _ in range(stack_size) for l in range(layer_size)]


def calc_receptive_fields(layer_size, stack_size, kernel_size):
    # matches ResTCN.calc_receptive_fields (list repetition, then sum)
    return int(sum([2 ** i for i in range(layer_size)] * stack_size * (kernel_size - 1)))


# ---------------- Pallas kernel ---------------------------------------------
def restcn_kernel(dilations, ksize, half,
                  x_ref, wp_ref, bp_ref, w1_ref, b1_ref, g1_ref, be1_ref,
                  w2_ref, b2_ref, g2_ref, be2_ref, out_ref, xpad_ref):
    """Whole ResTCN forward for one (small) batch, NCL layout in VMEM."""
    mm = MATMUL_DTYPE
    f32 = jnp.float32
    B, cin, t = x_ref.shape
    r = wp_ref.shape[0]

    # ---- F.pad folded into the kernel: zero a tiny VMEM canvas and drop the
    # real (B, Cin, T) input into its interior.
    xpad_ref[...] = jnp.zeros(xpad_ref.shape, f32)
    for b in range(B):
        xpad_ref[b, :, half:half + t] = x_ref[b]

    bp = bp_ref[...]                                            # (r, 1) f32

    # ---- preprocess 1x1 conv: (r, cin) @ (cin, Tp) per batch element.
    # Padded region becomes exactly the bias bp (conv1x1 of zeros + bias).
    ys = []
    for b in range(B):
        y0 = jnp.dot(wp_ref[...], xpad_ref[b].astype(mm),
                     preferred_element_type=f32)                # (r, Tp)
        ys.append(y0 + bp)

    # ---- residual stack (static unroll; time length shrinks per block).
    for i, d in enumerate(dilations):
        L = ys[0].shape[1]
        lout = L - d * (ksize - 1)
        hrf = d * (ksize - 1) // 2
        inv_n = 1.0 / (B * lout)                                # static constant

        w1f = w1_ref[i]                                         # (r, k*r) bf16 (pre-packed)
        w2m = w2_ref[i]                                         # (r, r)   bf16
        b1c = b1_ref[i]; g1c = g1_ref[i]; be1c = be1_ref[i]     # (r, 1) f32 columns
        b2c = b2_ref[i]; g2c = g2_ref[i]; be2c = be2_ref[i]

        # conv1: all taps fused into a single K = k*r matmul per batch element
        # (lane-shifted slices stacked along the sublane-aligned channel axis).
        c1s = []
        for b in range(B):
            xcat = jnp.concatenate(
                [ys[b][:, j * d:j * d + lout] for j in range(ksize)], axis=0)
            c1s.append(jnp.dot(w1f, xcat.astype(mm),
                               preferred_element_type=f32) + b1c)   # (r, lout)

        # bn1: training-mode biased batch stats over (batch, time) per channel,
        # one traversal, folded into a single per-channel scale/shift; relu1.
        s1 = sum(jnp.sum(c, axis=1, keepdims=True) for c in c1s)
        q1 = sum(jnp.sum(c * c, axis=1, keepdims=True) for c in c1s)
        mean1 = s1 * inv_n
        var1 = q1 * inv_n - mean1 * mean1
        scale1 = g1c * jax.lax.rsqrt(var1 + EPS)
        shift1 = be1c - mean1 * scale1
        hs = [jnp.maximum(c * scale1 + shift1, 0.0) for c in c1s]

        # conv2 (1x1): (r, r) @ (r, lout).
        c2s = [jnp.dot(w2m, h.astype(mm), preferred_element_type=f32) + b2c
               for h in hs]

        # bn2 (same fused one-pass form).
        s2 = sum(jnp.sum(c, axis=1, keepdims=True) for c in c2s)
        q2 = sum(jnp.sum(c * c, axis=1, keepdims=True) for c in c2s)
        mean2 = s2 * inv_n
        var2 = q2 * inv_n - mean2 * mean2
        scale2 = g2c * jax.lax.rsqrt(var2 + EPS)
        shift2 = be2c - mean2 * scale2

        # residual trim (static lane slice) + relu2.
        ys = [jnp.maximum(c2s[b] * scale2 + shift2 + ys[b][:, hrf:L - hrf], 0.0)
              for b in range(B)]

    # ---- lane-major output slab (r, B*T); the wrapper transposes back.
    for b in range(B):
        out_ref[:, b * t:(b + 1) * t] = ys[b]


def restcn_forward(x, length, params, layer_size=LAYER_SIZE,
                   stack_size=STACK_SIZE, kernel_size=KERNEL_SIZE):
    # `length` is accepted for signature parity with the PyTorch module but is
    # unused by its forward as well.
    del length
    dilations = tuple(build_dilations(layer_size, stack_size))
    rf = calc_receptive_fields(layer_size, stack_size, kernel_size)
    half = rf // 2
    b, t, cin = x.shape
    r = params["wp"].shape[0]
    nb = params["w1"].shape[0]
    k = params["w1"].shape[-1]

    # Host-side packing (layout plumbing only, no compute hoisting):
    #  * NCL input (channels on sublanes, time on lanes)
    #  * conv1 weights packed per block to (co, k*ci) for the fused-tap matmul
    #  * matmul weights cast to bf16 (halves weight DMA bytes; f32 accumulate)
    #  * per-channel vectors as (r, 1) columns (broadcast along lanes)
    x_ncl = jnp.transpose(x, (0, 2, 1))                                   # (B, Cin, T)
    wp_p = params["wp"].astype(MATMUL_DTYPE)                              # (r, cin)
    w1_p = (params["w1"].transpose(0, 1, 3, 2)
            .reshape(nb, r, k * r).astype(MATMUL_DTYPE))                  # (nb, r, k*r)
    w2_p = params["w2"].astype(MATMUL_DTYPE)                              # (nb, r, r)
    col = lambda a: a.reshape(a.shape[0], a.shape[1], 1)
    args = (x_ncl, wp_p, params["bp"].reshape(r, 1), w1_p,
            col(params["b1"]), col(params["g1"]), col(params["be1"]),
            w2_p, col(params["b2"]), col(params["g2"]), col(params["be2"]))

    def full_spec(a):
        nd = a.ndim
        return pl.BlockSpec(a.shape, lambda i, _nd=nd: (0,) * _nd)

    kernel = functools.partial(restcn_kernel, dilations, kernel_size, half)
    out = pl.pallas_call(
        kernel,
        out_shape=jax.ShapeDtypeStruct((r, b * t), jnp.float32),
        grid=(1,),
        in_specs=[full_spec(a) for a in args],
        out_specs=pl.BlockSpec((r, b * t), lambda i: (0, 0)),
        scratch_shapes=[pltpu.VMEM((b, cin, t + 2 * half), jnp.float32)],
        compiler_params=pltpu.CompilerParams(
            dimension_semantics=("arbitrary",),
            vmem_limit_bytes=32 * 1024 * 1024),
    )(*args)
    # (r, B*T) lane-major slab -> (B, T, r), matching the module's output.
    return jnp.transpose(out.reshape(r, b, t), (1, 2, 0))


# ---------------- pure-JAX reference (PyTorch-mirror structure) --------------
def reference_forward(x, raw, layer_size=LAYER_SIZE, stack_size=STACK_SIZE,
                      kernel_size=KERNEL_SIZE):
    """Mirrors the PyTorch forward (pad -> NCL -> per-tap convs -> two-pass BN).

    Matmul operands are cast to MATMUL_DTYPE exactly as in the kernel so the
    comparison isolates the kernel's restructuring, not the precision choice.
    """
    mm = MATMUL_DTYPE
    f32 = jnp.float32
    k = kernel_size
    dil = build_dilations(layer_size, stack_size)
    half = calc_receptive_fields(layer_size, stack_size, kernel_size) // 2

    xp = jnp.pad(x, ((0, 0), (half, half), (0, 0)))                 # F.pad on (B,T,C)
    y = jnp.transpose(xp, (0, 2, 1))                                # NCL
    y = jnp.einsum("oc,bct->bot", raw["wp"].astype(mm), y.astype(mm),
                   preferred_element_type=f32) + raw["bp"][None, :, None]
    for i, d in enumerate(dil):
        L = y.shape[-1]
        lout = L - d * (k - 1)
        c1 = raw["b1"][i][None, :, None] + sum(
            jnp.einsum("oc,bct->bot", raw["w1"][i, :, :, j].astype(mm),
                       y[:, :, j * d:j * d + lout].astype(mm),
                       preferred_element_type=f32)
            for j in range(k))
        m1 = jnp.mean(c1, axis=(0, 2), keepdims=True)
        v1 = jnp.mean((c1 - m1) ** 2, axis=(0, 2), keepdims=True)
        h = jnp.maximum((c1 - m1) / jnp.sqrt(v1 + EPS) * raw["g1"][i][None, :, None]
                        + raw["be1"][i][None, :, None], 0.0)
        c2 = jnp.einsum("oc,bct->bot", raw["w2"][i].astype(mm), h.astype(mm),
                        preferred_element_type=f32) + raw["b2"][i][None, :, None]
        m2 = jnp.mean(c2, axis=(0, 2), keepdims=True)
        v2 = jnp.mean((c2 - m2) ** 2, axis=(0, 2), keepdims=True)
        o = ((c2 - m2) / jnp.sqrt(v2 + EPS) * raw["g2"][i][None, :, None]
             + raw["be2"][i][None, :, None])
        hrf = d * (k - 1) // 2
        y = jnp.maximum(o + y[:, :, hrf:L - hrf], 0.0)
    return jnp.transpose(y, (0, 2, 1))                              # (B, T, C)


# ---------------- deterministic parameter init -------------------------------
def init_params(key, in_channels, res_channels, kernel_size, n_blocks):
    ks = jax.random.split(key, 10)
    f = jnp.float32
    return dict(
        wp=0.3 * jax.random.normal(ks[0], (res_channels, in_channels), f),
        bp=0.1 * jax.random.normal(ks[1], (res_channels,), f),
        w1=0.3 * jax.random.normal(ks[2], (n_blocks, res_channels, res_channels, kernel_size), f),
        b1=0.1 * jax.random.normal(ks[3], (n_blocks, res_channels), f),
        g1=1.0 + 0.1 * jax.random.normal(ks[4], (n_blocks, res_channels), f),
        be1=0.1 * jax.random.normal(ks[5], (n_blocks, res_channels), f),
        w2=0.3 * jax.random.normal(ks[6], (n_blocks, res_channels, res_channels), f),
        b2=0.1 * jax.random.normal(ks[7], (n_blocks, res_channels), f),
        g2=1.0 + 0.1 * jax.random.normal(ks[8], (n_blocks, res_channels), f),
        be2=0.1 * jax.random.normal(ks[9], (n_blocks, res_channels), f),
    )


if __name__ == "__main__":
    key = jax.random.PRNGKey(0)
    kx, kp = jax.random.split(key)

    B, T = 2, 16
    n_blocks = LAYER_SIZE * STACK_SIZE
    x = jax.random.normal(kx, (B, T, IN_CHANNELS), jnp.float32)
    length = jnp.full((B,), T, jnp.int32)   # unused, kept for signature parity
    params = init_params(kp, IN_CHANNELS, RES_CHANNELS, KERNEL_SIZE, n_blocks)

    out = jax.block_until_ready(restcn_forward(x, length, params))
    ref = jax.block_until_ready(reference_forward(x, params))

    assert out.shape == (B, T, RES_CHANNELS), out.shape
    err = float(jnp.max(jnp.abs(out - ref)))
    assert jnp.allclose(out, ref, atol=2e-2, rtol=2e-2), err
    print("KERNEL_OK")
</pallas_src>

<mosaic_0001>
module attributes {stable_mosaic.version = 11 : i64} {
  func.func @restcn_kernel(%arg0: i32, %arg1: memref<2x4x16xf32, #tpu.memory_space<vmem>>, %arg2: memref<8x4xbf16, #tpu.memory_space<vmem>>, %arg3: memref<8x1xf32, #tpu.memory_space<vmem>>, %arg4: memref<4x8x24xbf16, #tpu.memory_space<vmem>>, %arg5: memref<4x8x1xf32, #tpu.memory_space<vmem>>, %arg6: memref<4x8x1xf32, #tpu.memory_space<vmem>>, %arg7: memref<4x8x1xf32, #tpu.memory_space<vmem>>, %arg8: memref<4x8x8xbf16, #tpu.memory_space<vmem>>, %arg9: memref<4x8x1xf32, #tpu.memory_space<vmem>>, %arg10: memref<4x8x1xf32, #tpu.memory_space<vmem>>, %arg11: memref<4x8x1xf32, #tpu.memory_space<vmem>>, %arg12: memref<8x32xf32, #tpu.memory_space<vmem>>, %arg13: memref<2x4x28xf32, #tpu.memory_space<vmem>>) attributes {dimension_semantics = [#tpu.dimension_semantics<arbitrary>], iteration_bounds = array<i64: 1>, scalar_prefetch = 0 : i64, scratch_operands = 1 : i64, tpu.core_type = #tpu.core_type<tc>, window_params = [{pipeline_mode = #tpu.pipeline_mode<synchronous>, transform_indices = @transform_0, window_bounds = array<i64: 2, 4, 16>}, {pipeline_mode = #tpu.pipeline_mode<synchronous>, transform_indices = @transform_1, window_bounds = array<i64: 8, 4>}, {pipeline_mode = #tpu.pipeline_mode<synchronous>, transform_indices = @transform_2, window_bounds = array<i64: 8, 1>}, {pipeline_mode = #tpu.pipeline_mode<synchronous>, transform_indices = @transform_3, window_bounds = array<i64: 4, 8, 24>}, {pipeline_mode = #tpu.pipeline_mode<synchronous>, transform_indices = @transform_4, window_bounds = array<i64: 4, 8, 1>}, {pipeline_mode = #tpu.pipeline_mode<synchronous>, transform_indices = @transform_5, window_bounds = array<i64: 4, 8, 1>}, {pipeline_mode = #tpu.pipeline_mode<synchronous>, transform_indices = @transform_6, window_bounds = array<i64: 4, 8, 1>}, {pipeline_mode = #tpu.pipeline_mode<synchronous>, transform_indices = @transform_7, window_bounds = array<i64: 4, 8, 8>}, {pipeline_mode = #tpu.pipeline_mode<synchronous>, transform_indices = @transform_8, window_bounds = array<i64: 4, 8, 1>}, {pipeline_mode = #tpu.pipeline_mode<synchronous>, transform_indices = @transform_9, window_bounds = array<i64: 4, 8, 1>}, {pipeline_mode = #tpu.pipeline_mode<synchronous>, transform_indices = @transform_10, window_bounds = array<i64: 4, 8, 1>}, {pipeline_mode = #tpu.pipeline_mode<synchronous>, transform_indices = @transform_11, window_bounds = array<i64: 8, 32>}]} {
    %cst = arith.constant 0.000000e+00 : f32
    %0 = vector.broadcast %cst : f32 to vector<2x4x28xf32>
    %c0 = arith.constant 0 : index
    %c0_0 = arith.constant 0 : index
    %c0_1 = arith.constant 0 : index
    %1 = vector.load %arg13[%c0, %c0_0, %c0_1] : memref<2x4x28xf32, #tpu.memory_space<vmem>>, vector<2x4x28xf32>
    tpu.vector_store %arg13[%c0, %c0_0, %c0_1], %0 {strides = array<i32>} : memref<2x4x28xf32, #tpu.memory_space<vmem>>, vector<2x4x28xf32>,
    %c0_2 = arith.constant 0 : index
    %c0_3 = arith.constant 0 : index
    %c0_4 = arith.constant 0 : index
    %2 = vector.load %arg1[%c0_2, %c0_3, %c0_4] : memref<2x4x16xf32, #tpu.memory_space<vmem>>, vector<1x4x16xf32>
    %3 = vector.shape_cast %2 : vector<1x4x16xf32> to vector<4x16xf32>
    %c0_5 = arith.constant 0 : index
    %c0_6 = arith.constant 0 : index
    %c6 = arith.constant 6 : index
    %4 = vector.load %arg13[%c0_5, %c0_6, %c6] : memref<2x4x28xf32, #tpu.memory_space<vmem>>, vector<1x4x16xf32>
    %5 = vector.shape_cast %4 : vector<1x4x16xf32> to vector<4x16xf32>
    %6 = vector.shape_cast %3 : vector<4x16xf32> to vector<1x4x16xf32>
    tpu.vector_store %arg13[%c0_5, %c0_6, %c6], %6 {strides = array<i32>} : memref<2x4x28xf32, #tpu.memory_space<vmem>>, vector<1x4x16xf32>,
    %c1 = arith.constant 1 : index
    %c0_7 = arith.constant 0 : index
    %c0_8 = arith.constant 0 : index
    %7 = vector.load %arg1[%c1, %c0_7, %c0_8] : memref<2x4x16xf32, #tpu.memory_space<vmem>>, vector<1x4x16xf32>
    %8 = vector.shape_cast %7 : vector<1x4x16xf32> to vector<4x16xf32>
    %c1_9 = arith.constant 1 : index
    %c0_10 = arith.constant 0 : index
    %c6_11 = arith.constant 6 : index
    %9 = vector.load %arg13[%c1_9, %c0_10, %c6_11] : memref<2x4x28xf32, #tpu.memory_space<vmem>>, vector<1x4x16xf32>
    %10 = vector.shape_cast %9 : vector<1x4x16xf32> to vector<4x16xf32>
    %11 = vector.shape_cast %8 : vector<4x16xf32> to vector<1x4x16xf32>
    tpu.vector_store %arg13[%c1_9, %c0_10, %c6_11], %11 {strides = array<i32>} : memref<2x4x28xf32, #tpu.memory_space<vmem>>, vector<1x4x16xf32>,
    %c0_12 = arith.constant 0 : index
    %c0_13 = arith.constant 0 : index
    %12 = vector.load %arg3[%c0_12, %c0_13] : memref<8x1xf32, #tpu.memory_space<vmem>>, vector<8x1xf32>
    %c0_14 = arith.constant 0 : index
    %c0_15 = arith.constant 0 : index
    %13 = vector.load %arg2[%c0_14, %c0_15] : memref<8x4xbf16, #tpu.memory_space<vmem>>, vector<8x4xbf16>
    %c0_16 = arith.constant 0 : index
    %c0_17 = arith.constant 0 : index
    %c0_18 = arith.constant 0 : index
    %14 = vector.load %arg13[%c0_16, %c0_17, %c0_18] : memref<2x4x28xf32, #tpu.memory_space<vmem>>, vector<1x4x28xf32>
    %15 = vector.shape_cast %14 : vector<1x4x28xf32> to vector<4x28xf32>
    %16 = arith.truncf %15 : vector<4x28xf32> to vector<4x28xbf16>
    %cst_19 = arith.constant dense<0.000000e+00> : vector<8x28xf32>
    %17 = tpu.matmul %13, %16, %cst_19 {dimension_numbers = #tpu.dot_dimension_numbers<[1], [0], [0], [1], [0, 0, 1, 1], [], []>} : vector<8x4xbf16>, vector<4x28xbf16>, vector<8x28xf32> -> vector<8x28xf32>
    %18 = vector.broadcast %12 : vector<8x1xf32> to vector<8x28xf32>
    %19 = arith.addf %17, %18 : vector<8x28xf32>
    %c0_20 = arith.constant 0 : index
    %c0_21 = arith.constant 0 : index
    %20 = vector.load %arg2[%c0_20, %c0_21] : memref<8x4xbf16, #tpu.memory_space<vmem>>, vector<8x4xbf16>
    %c1_22 = arith.constant 1 : index
    %c0_23 = arith.constant 0 : index
    %c0_24 = arith.constant 0 : index
    %21 = vector.load %arg13[%c1_22, %c0_23, %c0_24] : memref<2x4x28xf32, #tpu.memory_space<vmem>>, vector<1x4x28xf32>
    %22 = vector.shape_cast %21 : vector<1x4x28xf32> to vector<4x28xf32>
    %23 = arith.truncf %22 : vector<4x28xf32> to vector<4x28xbf16>
    %cst_25 = arith.constant dense<0.000000e+00> : vector<8x28xf32>
    %24 = tpu.matmul %20, %23, %cst_25 {dimension_numbers = #tpu.dot_dimension_numbers<[1], [0], [0], [1], [0, 0, 1, 1], [], []>} : vector<8x4xbf16>, vector<4x28xbf16>, vector<8x28xf32> -> vector<8x28xf32>
    %25 = vector.broadcast %12 : vector<8x1xf32> to vector<8x28xf32>
    %26 = arith.addf %24, %25 : vector<8x28xf32>
    %c0_26 = arith.constant 0 : index
    %c0_27 = arith.constant 0 : index
    %c0_28 = arith.constant 0 : index
    %27 = vector.load %arg4[%c0_26, %c0_27, %c0_28] : memref<4x8x24xbf16, #tpu.memory_space<vmem>>, vector<1x8x24xbf16>
    %28 = vector.shape_cast %27 : vector<1x8x24xbf16> to vector<8x24xbf16>
    %c0_29 = arith.constant 0 : index
    %c0_30 = arith.constant 0 : index
    %c0_31 = arith.constant 0 : index
    %29 = vector.load %arg8[%c0_29, %c0_30, %c0_31] : memref<4x8x8xbf16, #tpu.memory_space<vmem>>, vector<1x8x8xbf16>
    %30 = vector.shape_cast %29 : vector<1x8x8xbf16> to vector<8x8xbf16>
    %c0_32 = arith.constant 0 : index
    %c0_33 = arith.constant 0 : index
    %c0_34 = arith.constant 0 : index
    %31 = vector.load %arg5[%c0_32, %c0_33, %c0_34] : memref<4x8x1xf32, #tpu.memory_space<vmem>>, vector<1x8x1xf32>
    %32 = vector.shape_cast %31 : vector<1x8x1xf32> to vector<8x1xf32>
    %c0_35 = arith.constant 0 : index
    %c0_36 = arith.constant 0 : index
    %c0_37 = arith.constant 0 : index
    %33 = vector.load %arg6[%c0_35, %c0_36, %c0_37] : memref<4x8x1xf32, #tpu.memory_space<vmem>>, vector<1x8x1xf32>
    %34 = vector.shape_cast %33 : vector<1x8x1xf32> to vector<8x1xf32>
    %c0_38 = arith.constant 0 : index
    %c0_39 = arith.constant 0 : index
    %c0_40 = arith.constant 0 : index
    %35 = vector.load %arg7[%c0_38, %c0_39, %c0_40] : memref<4x8x1xf32, #tpu.memory_space<vmem>>, vector<1x8x1xf32>
    %36 = vector.shape_cast %35 : vector<1x8x1xf32> to vector<8x1xf32>
    %c0_41 = arith.constant 0 : index
    %c0_42 = arith.constant 0 : index
    %c0_43 = arith.constant 0 : index
    %37 = vector.load %arg9[%c0_41, %c0_42, %c0_43] : memref<4x8x1xf32, #tpu.memory_space<vmem>>, vector<1x8x1xf32>
    %38 = vector.shape_cast %37 : vector<1x8x1xf32> to vector<8x1xf32>
    %c0_44 = arith.constant 0 : index
    %c0_45 = arith.constant 0 : index
    %c0_46 = arith.constant 0 : index
    %39 = vector.load %arg10[%c0_44, %c0_45, %c0_46] : memref<4x8x1xf32, #tpu.memory_space<vmem>>, vector<1x8x1xf32>
    %40 = vector.shape_cast %39 : vector<1x8x1xf32> to vector<8x1xf32>
    %c0_47 = arith.constant 0 : index
    %c0_48 = arith.constant 0 : index
    %c0_49 = arith.constant 0 : index
    %41 = vector.load %arg11[%c0_47, %c0_48, %c0_49] : memref<4x8x1xf32, #tpu.memory_space<vmem>>, vector<1x8x1xf32>
    %42 = vector.shape_cast %41 : vector<1x8x1xf32> to vector<8x1xf32>
    %43 = vector.extract_strided_slice %19 {offsets = [0, 0], sizes = [8, 26], strides = [1, 1]} : vector<8x28xf32> to vector<8x26xf32>
    %44 = vector.extract_strided_slice %19 {offsets = [0, 1], sizes = [8, 26], strides = [1, 1]} : vector<8x28xf32> to vector<8x26xf32>
    %45 = vector.extract_strided_slice %19 {offsets = [0, 2], sizes = [8, 26], strides = [1, 1]} : vector<8x28xf32> to vector<8x26xf32>
    %46 = tpu.concatenate %43, %44, %45 in 0 : vector<8x26xf32>, vector<8x26xf32>, vector<8x26xf32> -> vector<24x26xf32>
    %47 = arith.truncf %46 : vector<24x26xf32> to vector<24x26xbf16>
    %cst_50 = arith.constant dense<0.000000e+00> : vector<8x26xf32>
    %48 = tpu.matmul %28, %47, %cst_50 {dimension_numbers = #tpu.dot_dimension_numbers<[1], [0], [0], [1], [0, 0, 1, 1], [], []>} : vector<8x24xbf16>, vector<24x26xbf16>, vector<8x26xf32> -> vector<8x26xf32>
    %49 = vector.broadcast %32 : vector<8x1xf32> to vector<8x26xf32>
    %50 = arith.addf %48, %49 : vector<8x26xf32>
    %51 = vector.extract_strided_slice %26 {offsets = [0, 0], sizes = [8, 26], strides = [1, 1]} : vector<8x28xf32> to vector<8x26xf32>
    %52 = vector.extract_strided_slice %26 {offsets = [0, 1], sizes = [8, 26], strides = [1, 1]} : vector<8x28xf32> to vector<8x26xf32>
    %53 = vector.extract_strided_slice %26 {offsets = [0, 2], sizes = [8, 26], strides = [1, 1]} : vector<8x28xf32> to vector<8x26xf32>
    %54 = tpu.concatenate %51, %52, %53 in 0 : vector<8x26xf32>, vector<8x26xf32>, vector<8x26xf32> -> vector<24x26xf32>
    %55 = arith.truncf %54 : vector<24x26xf32> to vector<24x26xbf16>
    %cst_51 = arith.constant dense<0.000000e+00> : vector<8x26xf32>
    %56 = tpu.matmul %28, %55, %cst_51 {dimension_numbers = #tpu.dot_dimension_numbers<[1], [0], [0], [1], [0, 0, 1, 1], [], []>} : vector<8x24xbf16>, vector<24x26xbf16>, vector<8x26xf32> -> vector<8x26xf32>
    %57 = vector.broadcast %32 : vector<8x1xf32> to vector<8x26xf32>
    %58 = arith.addf %56, %57 : vector<8x26xf32>
    %cst_52 = arith.constant dense<0.000000e+00> : vector<8xf32>
    %59 = vector.multi_reduction <add>, %50, %cst_52 [1] : vector<8x26xf32> to vector<8xf32>
    %60 = vector.shape_cast %59 : vector<8xf32> to vector<8x1xf32>
    %cst_53 = arith.constant 0.000000e+00 : f32
    %61 = vector.broadcast %cst_53 : f32 to vector<8x1xf32>
    %62 = arith.addf %61, %60 : vector<8x1xf32>
    %cst_54 = arith.constant dense<0.000000e+00> : vector<8xf32>
    %63 = vector.multi_reduction <add>, %58, %cst_54 [1] : vector<8x26xf32> to vector<8xf32>
    %64 = vector.shape_cast %63 : vector<8xf32> to vector<8x1xf32>
    %65 = arith.addf %62, %64 : vector<8x1xf32>
    %66 = arith.mulf %50, %50 : vector<8x26xf32>
    %cst_55 = arith.constant dense<0.000000e+00> : vector<8xf32>
    %67 = vector.multi_reduction <add>, %66, %cst_55 [1] : vector<8x26xf32> to vector<8xf32>
    %68 = vector.shape_cast %67 : vector<8xf32> to vector<8x1xf32>
    %cst_56 = arith.constant 0.000000e+00 : f32
    %69 = vector.broadcast %cst_56 : f32 to vector<8x1xf32>
    %70 = arith.addf %69, %68 : vector<8x1xf32>
    %71 = arith.mulf %58, %58 : vector<8x26xf32>
    %cst_57 = arith.constant dense<0.000000e+00> : vector<8xf32>
    %72 = vector.multi_reduction <add>, %71, %cst_57 [1] : vector<8x26xf32> to vector<8xf32>
    %73 = vector.shape_cast %72 : vector<8xf32> to vector<8x1xf32>
    %74 = arith.addf %70, %73 : vector<8x1xf32>
    %cst_58 = arith.constant 0.0192307699 : f32
    %75 = vector.broadcast %cst_58 : f32 to vector<8x1xf32>
    %76 = arith.mulf %65, %75 : vector<8x1xf32>
    %cst_59 = arith.constant 0.0192307699 : f32
    %77 = vector.broadcast %cst_59 : f32 to vector<8x1xf32>
    %78 = arith.mulf %74, %77 : vector<8x1xf32>
    %79 = arith.mulf %76, %76 : vector<8x1xf32>
    %80 = arith.subf %78, %79 : vector<8x1xf32>
    %cst_60 = arith.constant 9.99999974E-6 : f32
    %81 = vector.broadcast %cst_60 : f32 to vector<8x1xf32>
    %82 = arith.addf %80, %81 : vector<8x1xf32>
    %83 = math.rsqrt %82 : vector<8x1xf32>
    %84 = arith.mulf %34, %83 : vector<8x1xf32>
    %85 = arith.mulf %76, %84 : vector<8x1xf32>
    %86 = arith.subf %36, %85 : vector<8x1xf32>
    %87 = vector.broadcast %84 : vector<8x1xf32> to vector<8x26xf32>
    %88 = arith.mulf %50, %87 : vector<8x26xf32>
    %89 = vector.broadcast %86 : vector<8x1xf32> to vector<8x26xf32>
    %90 = arith.addf %88, %89 : vector<8x26xf32>
    %cst_61 = arith.constant 0.000000e+00 : f32
    %91 = vector.broadcast %cst_61 : f32 to vector<8x26xf32>
    %92 = arith.maximumf %90, %91 : vector<8x26xf32>
    %93 = vector.broadcast %84 : vector<8x1xf32> to vector<8x26xf32>
    %94 = arith.mulf %58, %93 : vector<8x26xf32>
    %95 = vector.broadcast %86 : vector<8x1xf32> to vector<8x26xf32>
    %96 = arith.addf %94, %95 : vector<8x26xf32>
    %cst_62 = arith.constant 0.000000e+00 : f32
    %97 = vector.broadcast %cst_62 : f32 to vector<8x26xf32>
    %98 = arith.maximumf %96, %97 : vector<8x26xf32>
    %99 = arith.truncf %92 : vector<8x26xf32> to vector<8x26xbf16>
    %cst_63 = arith.constant dense<0.000000e+00> : vector<8x26xf32>
    %100 = tpu.matmul %30, %99, %cst_63 {dimension_numbers = #tpu.dot_dimension_numbers<[1], [0], [0], [1], [0, 0, 1, 1], [], []>} : vector<8x8xbf16>, vector<8x26xbf16>, vector<8x26xf32> -> vector<8x26xf32>
    %101 = vector.broadcast %38 : vector<8x1xf32> to vector<8x26xf32>
    %102 = arith.addf %100, %101 : vector<8x26xf32>
    %103 = arith.truncf %98 : vector<8x26xf32> to vector<8x26xbf16>
    %cst_64 = arith.constant dense<0.000000e+00> : vector<8x26xf32>
    %104 = tpu.matmul %30, %103, %cst_64 {dimension_numbers = #tpu.dot_dimension_numbers<[1], [0], [0], [1], [0, 0, 1, 1], [], []>} : vector<8x8xbf16>, vector<8x26xbf16>, vector<8x26xf32> -> vector<8x26xf32>
    %105 = vector.broadcast %38 : vector<8x1xf32> to vector<8x26xf32>
    %106 = arith.addf %104, %105 : vector<8x26xf32>
    %cst_65 = arith.constant dense<0.000000e+00> : vector<8xf32>
    %107 = vector.multi_reduction <add>, %102, %cst_65 [1] : vector<8x26xf32> to vector<8xf32>
    %108 = vector.shape_cast %107 : vector<8xf32> to vector<8x1xf32>
    %cst_66 = arith.constant 0.000000e+00 : f32
    %109 = vector.broadcast %cst_66 : f32 to vector<8x1xf32>
    %110 = arith.addf %109, %108 : vector<8x1xf32>
    %cst_67 = arith.constant dense<0.000000e+00> : vector<8xf32>
    %111 = vector.multi_reduction <add>, %106, %cst_67 [1] : vector<8x26xf32> to vector<8xf32>
    %112 = vector.shape_cast %111 : vector<8xf32> to vector<8x1xf32>
    %113 = arith.addf %110, %112 : vector<8x1xf32>
    %114 = arith.mulf %102, %102 : vector<8x26xf32>
    %cst_68 = arith.constant dense<0.000000e+00> : vector<8xf32>
    %115 = vector.multi_reduction <add>, %114, %cst_68 [1] : vector<8x26xf32> to vector<8xf32>
    %116 = vector.shape_cast %115 : vector<8xf32> to vector<8x1xf32>
    %cst_69 = arith.constant 0.000000e+00 : f32
    %117 = vector.broadcast %cst_69 : f32 to vector<8x1xf32>
    %118 = arith.addf %117, %116 : vector<8x1xf32>
    %119 = arith.mulf %106, %106 : vector<8x26xf32>
    %cst_70 = arith.constant dense<0.000000e+00> : vector<8xf32>
    %120 = vector.multi_reduction <add>, %119, %cst_70 [1] : vector<8x26xf32> to vector<8xf32>
    %121 = vector.shape_cast %120 : vector<8xf32> to vector<8x1xf32>
    %122 = arith.addf %118, %121 : vector<8x1xf32>
    %cst_71 = arith.constant 0.0192307699 : f32
    %123 = vector.broadcast %cst_71 : f32 to vector<8x1xf32>
    %124 = arith.mulf %113, %123 : vector<8x1xf32>
    %cst_72 = arith.constant 0.0192307699 : f32
    %125 = vector.broadcast %cst_72 : f32 to vector<8x1xf32>
    %126 = arith.mulf %122, %125 : vector<8x1xf32>
    %127 = arith.mulf %124, %124 : vector<8x1xf32>
    %128 = arith.subf %126, %127 : vector<8x1xf32>
    %cst_73 = arith.constant 9.99999974E-6 : f32
    %129 = vector.broadcast %cst_73 : f32 to vector<8x1xf32>
    %130 = arith.addf %128, %129 : vector<8x1xf32>
    %131 = math.rsqrt %130 : vector<8x1xf32>
    %132 = arith.mulf %40, %131 : vector<8x1xf32>
    %133 = arith.mulf %124, %132 : vector<8x1xf32>
    %134 = arith.subf %42, %133 : vector<8x1xf32>
    %135 = vector.broadcast %132 : vector<8x1xf32> to vector<8x26xf32>
    %136 = arith.mulf %102, %135 : vector<8x26xf32>
    %137 = vector.broadcast %134 : vector<8x1xf32> to vector<8x26xf32>
    %138 = arith.addf %136, %137 : vector<8x26xf32>
    %139 = vector.extract_strided_slice %19 {offsets = [0, 1], sizes = [8, 26], strides = [1, 1]} : vector<8x28xf32> to vector<8x26xf32>
    %140 = arith.addf %138, %139 : vector<8x26xf32>
    %cst_74 = arith.constant 0.000000e+00 : f32
    %141 = vector.broadcast %cst_74 : f32 to vector<8x26xf32>
    %142 = arith.maximumf %140, %141 : vector<8x26xf32>
    %143 = vector.broadcast %132 : vector<8x1xf32> to vector<8x26xf32>
    %144 = arith.mulf %106, %143 : vector<8x26xf32>
    %145 = vector.broadcast %134 : vector<8x1xf32> to vector<8x26xf32>
    %146 = arith.addf %144, %145 : vector<8x26xf32>
    %147 = vector.extract_strided_slice %26 {offsets = [0, 1], sizes = [8, 26], strides = [1, 1]} : vector<8x28xf32> to vector<8x26xf32>
    %148 = arith.addf %146, %147 : vector<8x26xf32>
    %cst_75 = arith.constant 0.000000e+00 : f32
    %149 = vector.broadcast %cst_75 : f32 to vector<8x26xf32>
    %150 = arith.maximumf %148, %149 : vector<8x26xf32>
    %c1_76 = arith.constant 1 : index
    %c0_77 = arith.constant 0 : index
    %c0_78 = arith.constant 0 : index
    %151 = vector.load %arg4[%c1_76, %c0_77, %c0_78] : memref<4x8x24xbf16, #tpu.memory_space<vmem>>, vector<1x8x24xbf16>
    %152 = vector.shape_cast %151 : vector<1x8x24xbf16> to vector<8x24xbf16>
    %c1_79 = arith.constant 1 : index
    %c0_80 = arith.constant 0 : index
    %c0_81 = arith.constant 0 : index
    %153 = vector.load %arg8[%c1_79, %c0_80, %c0_81] : memref<4x8x8xbf16, #tpu.memory_space<vmem>>, vector<1x8x8xbf16>
    %154 = vector.shape_cast %153 : vector<1x8x8xbf16> to vector<8x8xbf16>
    %c1_82 = arith.constant 1 : index
    %c0_83 = arith.constant 0 : index
    %c0_84 = arith.constant 0 : index
    %155 = vector.load %arg5[%c1_82, %c0_83, %c0_84] : memref<4x8x1xf32, #tpu.memory_space<vmem>>, vector<1x8x1xf32>
    %156 = vector.shape_cast %155 : vector<1x8x1xf32> to vector<8x1xf32>
    %c1_85 = arith.constant 1 : index
    %c0_86 = arith.constant 0 : index
    %c0_87 = arith.constant 0 : index
    %157 = vector.load %arg6[%c1_85, %c0_86, %c0_87] : memref<4x8x1xf32, #tpu.memory_space<vmem>>, vector<1x8x1xf32>
    %158 = vector.shape_cast %157 : vector<1x8x1xf32> to vector<8x1xf32>
    %c1_88 = arith.constant 1 : index
    %c0_89 = arith.constant 0 : index
    %c0_90 = arith.constant 0 : index
    %159 = vector.load %arg7[%c1_88, %c0_89, %c0_90] : memref<4x8x1xf32, #tpu.memory_space<vmem>>, vector<1x8x1xf32>
    %160 = vector.shape_cast %159 : vector<1x8x1xf32> to vector<8x1xf32>
    %c1_91 = arith.constant 1 : index
    %c0_92 = arith.constant 0 : index
    %c0_93 = arith.constant 0 : index
    %161 = vector.load %arg9[%c1_91, %c0_92, %c0_93] : memref<4x8x1xf32, #tpu.memory_space<vmem>>, vector<1x8x1xf32>
    %162 = vector.shape_cast %161 : vector<1x8x1xf32> to vector<8x1xf32>
    %c1_94 = arith.constant 1 : index
    %c0_95 = arith.constant 0 : index
    %c0_96 = arith.constant 0 : index
    %163 = vector.load %arg10[%c1_94, %c0_95, %c0_96] : memref<4x8x1xf32, #tpu.memory_space<vmem>>, vector<1x8x1xf32>
    %164 = vector.shape_cast %163 : vector<1x8x1xf32> to vector<8x1xf32>
    %c1_97 = arith.constant 1 : index
    %c0_98 = arith.constant 0 : index
    %c0_99 = arith.constant 0 : index
    %165 = vector.load %arg11[%c1_97, %c0_98, %c0_99] : memref<4x8x1xf32, #tpu.memory_space<vmem>>, vector<1x8x1xf32>
    %166 = vector.shape_cast %165 : vector<1x8x1xf32> to vector<8x1xf32>
    %167 = vector.extract_strided_slice %142 {offsets = [0, 0], sizes = [8, 22], strides = [1, 1]} : vector<8x26xf32> to vector<8x22xf32>
    %168 = vector.extract_strided_slice %142 {offsets = [0, 2], sizes = [8, 22], strides = [1, 1]} : vector<8x26xf32> to vector<8x22xf32>
    %169 = vector.extract_strided_slice %142 {offsets = [0, 4], sizes = [8, 22], strides = [1, 1]} : vector<8x26xf32> to vector<8x22xf32>
    %170 = tpu.concatenate %167, %168, %169 in 0 : vector<8x22xf32>, vector<8x22xf32>, vector<8x22xf32> -> vector<24x22xf32>
    %171 = arith.truncf %170 : vector<24x22xf32> to vector<24x22xbf16>
    %cst_100 = arith.constant dense<0.000000e+00> : vector<8x22xf32>
    %172 = tpu.matmul %152, %171, %cst_100 {dimension_numbers = #tpu.dot_dimension_numbers<[1], [0], [0], [1], [0, 0, 1, 1], [], []>} : vector<8x24xbf16>, vector<24x22xbf16>, vector<8x22xf32> -> vector<8x22xf32>
    %173 = vector.broadcast %156 : vector<8x1xf32> to vector<8x22xf32>
    %174 = arith.addf %172, %173 : vector<8x22xf32>
    %175 = vector.extract_strided_slice %150 {offsets = [0, 0], sizes = [8, 22], strides = [1, 1]} : vector<8x26xf32> to vector<8x22xf32>
    %176 = vector.extract_strided_slice %150 {offsets = [0, 2], sizes = [8, 22], strides = [1, 1]} : vector<8x26xf32> to vector<8x22xf32>
    %177 = vector.extract_strided_slice %150 {offsets = [0, 4], sizes = [8, 22], strides = [1, 1]} : vector<8x26xf32> to vector<8x22xf32>
    %178 = tpu.concatenate %175, %176, %177 in 0 : vector<8x22xf32>, vector<8x22xf32>, vector<8x22xf32> -> vector<24x22xf32>
    %179 = arith.truncf %178 : vector<24x22xf32> to vector<24x22xbf16>
    %cst_101 = arith.constant dense<0.000000e+00> : vector<8x22xf32>
    %180 = tpu.matmul %152, %179, %cst_101 {dimension_numbers = #tpu.dot_dimension_numbers<[1], [0], [0], [1], [0, 0, 1, 1], [], []>} : vector<8x24xbf16>, vector<24x22xbf16>, vector<8x22xf32> -> vector<8x22xf32>
    %181 = vector.broadcast %156 : vector<8x1xf32> to vector<8x22xf32>
    %182 = arith.addf %180, %181 : vector<8x22xf32>
    %cst_102 = arith.constant dense<0.000000e+00> : vector<8xf32>
    %183 = vector.multi_reduction <add>, %174, %cst_102 [1] : vector<8x22xf32> to vector<8xf32>
    %184 = vector.shape_cast %183 : vector<8xf32> to vector<8x1xf32>
    %cst_103 = arith.constant 0.000000e+00 : f32
    %185 = vector.broadcast %cst_103 : f32 to vector<8x1xf32>
    %186 = arith.addf %185, %184 : vector<8x1xf32>
    %cst_104 = arith.constant dense<0.000000e+00> : vector<8xf32>
    %187 = vector.multi_reduction <add>, %182, %cst_104 [1] : vector<8x22xf32> to vector<8xf32>
    %188 = vector.shape_cast %187 : vector<8xf32> to vector<8x1xf32>
    %189 = arith.addf %186, %188 : vector<8x1xf32>
    %190 = arith.mulf %174, %174 : vector<8x22xf32>
    %cst_105 = arith.constant dense<0.000000e+00> : vector<8xf32>
    %191 = vector.multi_reduction <add>, %190, %cst_105 [1] : vector<8x22xf32> to vector<8xf32>
    %192 = vector.shape_cast %191 : vector<8xf32> to vector<8x1xf32>
    %cst_106 = arith.constant 0.000000e+00 : f32
    %193 = vector.broadcast %cst_106 : f32 to vector<8x1xf32>
    %194 = arith.addf %193, %192 : vector<8x1xf32>
    %195 = arith.mulf %182, %182 : vector<8x22xf32>
    %cst_107 = arith.constant dense<0.000000e+00> : vector<8xf32>
    %196 = vector.multi_reduction <add>, %195, %cst_107 [1] : vector<8x22xf32> to vector<8xf32>
    %197 = vector.shape_cast %196 : vector<8xf32> to vector<8x1xf32>
    %198 = arith.addf %194, %197 : vector<8x1xf32>
    %cst_108 = arith.constant 0.0227272734 : f32
    %199 = vector.broadcast %cst_108 : f32 to vector<8x1xf32>
    %200 = arith.mulf %189, %199 : vector<8x1xf32>
    %cst_109 = arith.constant 0.0227272734 : f32
    %201 = vector.broadcast %cst_109 : f32 to vector<8x1xf32>
    %202 = arith.mulf %198, %201 : vector<8x1xf32>
    %203 = arith.mulf %200, %200 : vector<8x1xf32>
    %204 = arith.subf %202, %203 : vector<8x1xf32>
    %cst_110 = arith.constant 9.99999974E-6 : f32
    %205 = vector.broadcast %cst_110 : f32 to vector<8x1xf32>
    %206 = arith.addf %204, %205 : vector<8x1xf32>
    %207 = math.rsqrt %206 : vector<8x1xf32>
    %208 = arith.mulf %158, %207 : vector<8x1xf32>
    %209 = arith.mulf %200, %208 : vector<8x1xf32>
    %210 = arith.subf %160, %209 : vector<8x1xf32>
    %211 = vector.broadcast %208 : vector<8x1xf32> to vector<8x22xf32>
    %212 = arith.mulf %174, %211 : vector<8x22xf32>
    %213 = vector.broadcast %210 : vector<8x1xf32> to vector<8x22xf32>
    %214 = arith.addf %212, %213 : vector<8x22xf32>
    %cst_111 = arith.constant 0.000000e+00 : f32
    %215 = vector.broadcast %cst_111 : f32 to vector<8x22xf32>
    %216 = arith.maximumf %214, %215 : vector<8x22xf32>
    %217 = vector.broadcast %208 : vector<8x1xf32> to vector<8x22xf32>
    %218 = arith.mulf %182, %217 : vector<8x22xf32>
    %219 = vector.broadcast %210 : vector<8x1xf32> to vector<8x22xf32>
    %220 = arith.addf %218, %219 : vector<8x22xf32>
    %cst_112 = arith.constant 0.000000e+00 : f32
    %221 = vector.broadcast %cst_112 : f32 to vector<8x22xf32>
    %222 = arith.maximumf %220, %221 : vector<8x22xf32>
    %223 = arith.truncf %216 : vector<8x22xf32> to vector<8x22xbf16>
    %cst_113 = arith.constant dense<0.000000e+00> : vector<8x22xf32>
    %224 = tpu.matmul %154, %223, %cst_113 {dimension_numbers = #tpu.dot_dimension_numbers<[1], [0], [0], [1], [0, 0, 1, 1], [], []>} : vector<8x8xbf16>, vector<8x22xbf16>, vector<8x22xf32> -> vector<8x22xf32>
    %225 = vector.broadcast %162 : vector<8x1xf32> to vector<8x22xf32>
    %226 = arith.addf %224, %225 : vector<8x22xf32>
    %227 = arith.truncf %222 : vector<8x22xf32> to vector<8x22xbf16>
    %cst_114 = arith.constant dense<0.000000e+00> : vector<8x22xf32>
    %228 = tpu.matmul %154, %227, %cst_114 {dimension_numbers = #tpu.dot_dimension_numbers<[1], [0], [0], [1], [0, 0, 1, 1], [], []>} : vector<8x8xbf16>, vector<8x22xbf16>, vector<8x22xf32> -> vector<8x22xf32>
    %229 = vector.broadcast %162 : vector<8x1xf32> to vector<8x22xf32>
    %230 = arith.addf %228, %229 : vector<8x22xf32>
    %cst_115 = arith.constant dense<0.000000e+00> : vector<8xf32>
    %231 = vector.multi_reduction <add>, %226, %cst_115 [1] : vector<8x22xf32> to vector<8xf32>
    %232 = vector.shape_cast %231 : vector<8xf32> to vector<8x1xf32>
    %cst_116 = arith.constant 0.000000e+00 : f32
    %233 = vector.broadcast %cst_116 : f32 to vector<8x1xf32>
    %234 = arith.addf %233, %232 : vector<8x1xf32>
    %cst_117 = arith.constant dense<0.000000e+00> : vector<8xf32>
    %235 = vector.multi_reduction <add>, %230, %cst_117 [1] : vector<8x22xf32> to vector<8xf32>
    %236 = vector.shape_cast %235 : vector<8xf32> to vector<8x1xf32>
    %237 = arith.addf %234, %236 : vector<8x1xf32>
    %238 = arith.mulf %226, %226 : vector<8x22xf32>
    %cst_118 = arith.constant dense<0.000000e+00> : vector<8xf32>
    %239 = vector.multi_reduction <add>, %238, %cst_118 [1] : vector<8x22xf32> to vector<8xf32>
    %240 = vector.shape_cast %239 : vector<8xf32> to vector<8x1xf32>
    %cst_119 = arith.constant 0.000000e+00 : f32
    %241 = vector.broadcast %cst_119 : f32 to vector<8x1xf32>
    %242 = arith.addf %241, %240 : vector<8x1xf32>
    %243 = arith.mulf %230, %230 : vector<8x22xf32>
    %cst_120 = arith.constant dense<0.000000e+00> : vector<8xf32>
    %244 = vector.multi_reduction <add>, %243, %cst_120 [1] : vector<8x22xf32> to vector<8xf32>
    %245 = vector.shape_cast %244 : vector<8xf32> to vector<8x1xf32>
    %246 = arith.addf %242, %245 : vector<8x1xf32>
    %cst_121 = arith.constant 0.0227272734 : f32
    %247 = vector.broadcast %cst_121 : f32 to vector<8x1xf32>
    %248 = arith.mulf %237, %247 : vector<8x1xf32>
    %cst_122 = arith.constant 0.0227272734 : f32
    %249 = vector.broadcast %cst_122 : f32 to vector<8x1xf32>
    %250 = arith.mulf %246, %249 : vector<8x1xf32>
    %251 = arith.mulf %248, %248 : vector<8x1xf32>
    %252 = arith.subf %250, %251 : vector<8x1xf32>
    %cst_123 = arith.constant 9.99999974E-6 : f32
    %253 = vector.broadcast %cst_123 : f32 to vector<8x1xf32>
    %254 = arith.addf %252, %253 : vector<8x1xf32>
    %255 = math.rsqrt %254 : vector<8x1xf32>
    %256 = arith.mulf %164, %255 : vector<8x1xf32>
    %257 = arith.mulf %248, %256 : vector<8x1xf32>
    %258 = arith.subf %166, %257 : vector<8x1xf32>
    %259 = vector.broadcast %256 : vector<8x1xf32> to vector<8x22xf32>
    %260 = arith.mulf %226, %259 : vector<8x22xf32>
    %261 = vector.broadcast %258 : vector<8x1xf32> to vector<8x22xf32>
    %262 = arith.addf %260, %261 : vector<8x22xf32>
    %263 = vector.extract_strided_slice %142 {offsets = [0, 2], sizes = [8, 22], strides = [1, 1]} : vector<8x26xf32> to vector<8x22xf32>
    %264 = arith.addf %262, %263 : vector<8x22xf32>
    %cst_124 = arith.constant 0.000000e+00 : f32
    %265 = vector.broadcast %cst_124 : f32 to vector<8x22xf32>
    %266 = arith.maximumf %264, %265 : vector<8x22xf32>
    %267 = vector.broadcast %256 : vector<8x1xf32> to vector<8x22xf32>
    %268 = arith.mulf %230, %267 : vector<8x22xf32>
    %269 = vector.broadcast %258 : vector<8x1xf32> to vector<8x22xf32>
    %270 = arith.addf %268, %269 : vector<8x22xf32>
    %271 = vector.extract_strided_slice %150 {offsets = [0, 2], sizes = [8, 22], strides = [1, 1]} : vector<8x26xf32> to vector<8x22xf32>
    %272 = arith.addf %270, %271 : vector<8x22xf32>
    %cst_125 = arith.constant 0.000000e+00 : f32
    %273 = vector.broadcast %cst_125 : f32 to vector<8x22xf32>
    %274 = arith.maximumf %272, %273 : vector<8x22xf32>
    %c2 = arith.constant 2 : index
    %c0_126 = arith.constant 0 : index
    %c0_127 = arith.constant 0 : index
    %275 = vector.load %arg4[%c2, %c0_126, %c0_127] : memref<4x8x24xbf16, #tpu.memory_space<vmem>>, vector<1x8x24xbf16>
    %276 = vector.shape_cast %275 : vector<1x8x24xbf16> to vector<8x24xbf16>
    %c2_128 = arith.constant 2 : index
    %c0_129 = arith.constant 0 : index
    %c0_130 = arith.constant 0 : index
    %277 = vector.load %arg8[%c2_128, %c0_129, %c0_130] : memref<4x8x8xbf16, #tpu.memory_space<vmem>>, vector<1x8x8xbf16>
    %278 = vector.shape_cast %277 : vector<1x8x8xbf16> to vector<8x8xbf16>
    %c2_131 = arith.constant 2 : index
    %c0_132 = arith.constant 0 : index
    %c0_133 = arith.constant 0 : index
    %279 = vector.load %arg5[%c2_131, %c0_132, %c0_133] : memref<4x8x1xf32, #tpu.memory_space<vmem>>, vector<1x8x1xf32>
    %280 = vector.shape_cast %279 : vector<1x8x1xf32> to vector<8x1xf32>
    %c2_134 = arith.constant 2 : index
    %c0_135 = arith.constant 0 : index
    %c0_136 = arith.constant 0 : index
    %281 = vector.load %arg6[%c2_134, %c0_135, %c0_136] : memref<4x8x1xf32, #tpu.memory_space<vmem>>, vector<1x8x1xf32>
    %282 = vector.shape_cast %281 : vector<1x8x1xf32> to vector<8x1xf32>
    %c2_137 = arith.constant 2 : index
    %c0_138 = arith.constant 0 : index
    %c0_139 = arith.constant 0 : index
    %283 = vector.load %arg7[%c2_137, %c0_138, %c0_139] : memref<4x8x1xf32, #tpu.memory_space<vmem>>, vector<1x8x1xf32>
    %284 = vector.shape_cast %283 : vector<1x8x1xf32> to vector<8x1xf32>
    %c2_140 = arith.constant 2 : index
    %c0_141 = arith.constant 0 : index
    %c0_142 = arith.constant 0 : index
    %285 = vector.load %arg9[%c2_140, %c0_141, %c0_142] : memref<4x8x1xf32, #tpu.memory_space<vmem>>, vector<1x8x1xf32>
    %286 = vector.shape_cast %285 : vector<1x8x1xf32> to vector<8x1xf32>
    %c2_143 = arith.constant 2 : index
    %c0_144 = arith.constant 0 : index
    %c0_145 = arith.constant 0 : index
    %287 = vector.load %arg10[%c2_143, %c0_144, %c0_145] : memref<4x8x1xf32, #tpu.memory_space<vmem>>, vector<1x8x1xf32>
    %288 = vector.shape_cast %287 : vector<1x8x1xf32> to vector<8x1xf32>
    %c2_146 = arith.constant 2 : index
    %c0_147 = arith.constant 0 : index
    %c0_148 = arith.constant 0 : index
    %289 = vector.load %arg11[%c2_146, %c0_147, %c0_148] : memref<4x8x1xf32, #tpu.memory_space<vmem>>, vector<1x8x1xf32>
    %290 = vector.shape_cast %289 : vector<1x8x1xf32> to vector<8x1xf32>
    %291 = vector.extract_strided_slice %266 {offsets = [0, 0], sizes = [8, 20], strides = [1, 1]} : vector<8x22xf32> to vector<8x20xf32>
    %292 = vector.extract_strided_slice %266 {offsets = [0, 1], sizes = [8, 20], strides = [1, 1]} : vector<8x22xf32> to vector<8x20xf32>
    %293 = vector.extract_strided_slice %266 {offsets = [0, 2], sizes = [8, 20], strides = [1, 1]} : vector<8x22xf32> to vector<8x20xf32>
    %294 = tpu.concatenate %291, %292, %293 in 0 : vector<8x20xf32>, vector<8x20xf32>, vector<8x20xf32> -> vector<24x20xf32>
    %295 = arith.truncf %294 : vector<24x20xf32> to vector<24x20xbf16>
    %cst_149 = arith.constant dense<0.000000e+00> : vector<8x20xf32>
    %296 = tpu.matmul %276, %295, %cst_149 {dimension_numbers = #tpu.dot_dimension_numbers<[1], [0], [0], [1], [0, 0, 1, 1], [], []>} : vector<8x24xbf16>, vector<24x20xbf16>, vector<8x20xf32> -> vector<8x20xf32>
    %297 = vector.broadcast %280 : vector<8x1xf32> to vector<8x20xf32>
    %298 = arith.addf %296, %297 : vector<8x20xf32>
    %299 = vector.extract_strided_slice %274 {offsets = [0, 0], sizes = [8, 20], strides = [1, 1]} : vector<8x22xf32> to vector<8x20xf32>
    %300 = vector.extract_strided_slice %274 {offsets = [0, 1], sizes = [8, 20], strides = [1, 1]} : vector<8x22xf32> to vector<8x20xf32>
    %301 = vector.extract_strided_slice %274 {offsets = [0, 2], sizes = [8, 20], strides = [1, 1]} : vector<8x22xf32> to vector<8x20xf32>
    %302 = tpu.concatenate %299, %300, %301 in 0 : vector<8x20xf32>, vector<8x20xf32>, vector<8x20xf32> -> vector<24x20xf32>
    %303 = arith.truncf %302 : vector<24x20xf32> to vector<24x20xbf16>
    %cst_150 = arith.constant dense<0.000000e+00> : vector<8x20xf32>
    %304 = tpu.matmul %276, %303, %cst_150 {dimension_numbers = #tpu.dot_dimension_numbers<[1], [0], [0], [1], [0, 0, 1, 1], [], []>} : vector<8x24xbf16>, vector<24x20xbf16>, vector<8x20xf32> -> vector<8x20xf32>
    %305 = vector.broadcast %280 : vector<8x1xf32> to vector<8x20xf32>
    %306 = arith.addf %304, %305 : vector<8x20xf32>
    %cst_151 = arith.constant dense<0.000000e+00> : vector<8xf32>
    %307 = vector.multi_reduction <add>, %298, %cst_151 [1] : vector<8x20xf32> to vector<8xf32>
    %308 = vector.shape_cast %307 : vector<8xf32> to vector<8x1xf32>
    %cst_152 = arith.constant 0.000000e+00 : f32
    %309 = vector.broadcast %cst_152 : f32 to vector<8x1xf32>
    %310 = arith.addf %309, %308 : vector<8x1xf32>
    %cst_153 = arith.constant dense<0.000000e+00> : vector<8xf32>
    %311 = vector.multi_reduction <add>, %306, %cst_153 [1] : vector<8x20xf32> to vector<8xf32>
    %312 = vector.shape_cast %311 : vector<8xf32> to vector<8x1xf32>
    %313 = arith.addf %310, %312 : vector<8x1xf32>
    %314 = arith.mulf %298, %298 : vector<8x20xf32>
    %cst_154 = arith.constant dense<0.000000e+00> : vector<8xf32>
    %315 = vector.multi_reduction <add>, %314, %cst_154 [1] : vector<8x20xf32> to vector<8xf32>
    %316 = vector.shape_cast %315 : vector<8xf32> to vector<8x1xf32>
    %cst_155 = arith.constant 0.000000e+00 : f32
    %317 = vector.broadcast %cst_155 : f32 to vector<8x1xf32>
    %318 = arith.addf %317, %316 : vector<8x1xf32>
    %319 = arith.mulf %306, %306 : vector<8x20xf32>
    %cst_156 = arith.constant dense<0.000000e+00> : vector<8xf32>
    %320 = vector.multi_reduction <add>, %319, %cst_156 [1] : vector<8x20xf32> to vector<8xf32>
    %321 = vector.shape_cast %320 : vector<8xf32> to vector<8x1xf32>
    %322 = arith.addf %318, %321 : vector<8x1xf32>
    %cst_157 = arith.constant 2.500000e-02 : f32
    %323 = vector.broadcast %cst_157 : f32 to vector<8x1xf32>
    %324 = arith.mulf %313, %323 : vector<8x1xf32>
    %cst_158 = arith.constant 2.500000e-02 : f32
    %325 = vector.broadcast %cst_158 : f32 to vector<8x1xf32>
    %326 = arith.mulf %322, %325 : vector<8x1xf32>
    %327 = arith.mulf %324, %324 : vector<8x1xf32>
    %328 = arith.subf %326, %327 : vector<8x1xf32>
    %cst_159 = arith.constant 9.99999974E-6 : f32
    %329 = vector.broadcast %cst_159 : f32 to vector<8x1xf32>
    %330 = arith.addf %328, %329 : vector<8x1xf32>
    %331 = math.rsqrt %330 : vector<8x1xf32>
    %332 = arith.mulf %282, %331 : vector<8x1xf32>
    %333 = arith.mulf %324, %332 : vector<8x1xf32>
    %334 = arith.subf %284, %333 : vector<8x1xf32>
    %335 = vector.broadcast %332 : vector<8x1xf32> to vector<8x20xf32>
    %336 = arith.mulf %298, %335 : vector<8x20xf32>
    %337 = vector.broadcast %334 : vector<8x1xf32> to vector<8x20xf32>
    %338 = arith.addf %336, %337 : vector<8x20xf32>
    %cst_160 = arith.constant 0.000000e+00 : f32
    %339 = vector.broadcast %cst_160 : f32 to vector<8x20xf32>
    %340 = arith.maximumf %338, %339 : vector<8x20xf32>
    %341 = vector.broadcast %332 : vector<8x1xf32> to vector<8x20xf32>
    %342 = arith.mulf %306, %341 : vector<8x20xf32>
    %343 = vector.broadcast %334 : vector<8x1xf32> to vector<8x20xf32>
    %344 = arith.addf %342, %343 : vector<8x20xf32>
    %cst_161 = arith.constant 0.000000e+00 : f32
    %345 = vector.broadcast %cst_161 : f32 to vector<8x20xf32>
    %346 = arith.maximumf %344, %345 : vector<8x20xf32>
    %347 = arith.truncf %340 : vector<8x20xf32> to vector<8x20xbf16>
    %cst_162 = arith.constant dense<0.000000e+00> : vector<8x20xf32>
    %348 = tpu.matmul %278, %347, %cst_162 {dimension_numbers = #tpu.dot_dimension_numbers<[1], [0], [0], [1], [0, 0, 1, 1], [], []>} : vector<8x8xbf16>, vector<8x20xbf16>, vector<8x20xf32> -> vector<8x20xf32>
    %349 = vector.broadcast %286 : vector<8x1xf32> to vector<8x20xf32>
    %350 = arith.addf %348, %349 : vector<8x20xf32>
    %351 = arith.truncf %346 : vector<8x20xf32> to vector<8x20xbf16>
    %cst_163 = arith.constant dense<0.000000e+00> : vector<8x20xf32>
    %352 = tpu.matmul %278, %351, %cst_163 {dimension_numbers = #tpu.dot_dimension_numbers<[1], [0], [0], [1], [0, 0, 1, 1], [], []>} : vector<8x8xbf16>, vector<8x20xbf16>, vector<8x20xf32> -> vector<8x20xf32>
    %353 = vector.broadcast %286 : vector<8x1xf32> to vector<8x20xf32>
    %354 = arith.addf %352, %353 : vector<8x20xf32>
    %cst_164 = arith.constant dense<0.000000e+00> : vector<8xf32>
    %355 = vector.multi_reduction <add>, %350, %cst_164 [1] : vector<8x20xf32> to vector<8xf32>
    %356 = vector.shape_cast %355 : vector<8xf32> to vector<8x1xf32>
    %cst_165 = arith.constant 0.000000e+00 : f32
    %357 = vector.broadcast %cst_165 : f32 to vector<8x1xf32>
    %358 = arith.addf %357, %356 : vector<8x1xf32>
    %cst_166 = arith.constant dense<0.000000e+00> : vector<8xf32>
    %359 = vector.multi_reduction <add>, %354, %cst_166 [1] : vector<8x20xf32> to vector<8xf32>
    %360 = vector.shape_cast %359 : vector<8xf32> to vector<8x1xf32>
    %361 = arith.addf %358, %360 : vector<8x1xf32>
    %362 = arith.mulf %350, %350 : vector<8x20xf32>
    %cst_167 = arith.constant dense<0.000000e+00> : vector<8xf32>
    %363 = vector.multi_reduction <add>, %362, %cst_167 [1] : vector<8x20xf32> to vector<8xf32>
    %364 = vector.shape_cast %363 : vector<8xf32> to vector<8x1xf32>
    %cst_168 = arith.constant 0.000000e+00 : f32
    %365 = vector.broadcast %cst_168 : f32 to vector<8x1xf32>
    %366 = arith.addf %365, %364 : vector<8x1xf32>
    %367 = arith.mulf %354, %354 : vector<8x20xf32>
    %cst_169 = arith.constant dense<0.000000e+00> : vector<8xf32>
    %368 = vector.multi_reduction <add>, %367, %cst_169 [1] : vector<8x20xf32> to vector<8xf32>
    %369 = vector.shape_cast %368 : vector<8xf32> to vector<8x1xf32>
    %370 = arith.addf %366, %369 : vector<8x1xf32>
    %cst_170 = arith.constant 2.500000e-02 : f32
    %371 = vector.broadcast %cst_170 : f32 to vector<8x1xf32>
    %372 = arith.mulf %361, %371 : vector<8x1xf32>
    %cst_171 = arith.constant 2.500000e-02 : f32
    %373 = vector.broadcast %cst_171 : f32 to vector<8x1xf32>
    %374 = arith.mulf %370, %373 : vector<8x1xf32>
    %375 = arith.mulf %372, %372 : vector<8x1xf32>
    %376 = arith.subf %374, %375 : vector<8x1xf32>
    %cst_172 = arith.constant 9.99999974E-6 : f32
    %377 = vector.broadcast %cst_172 : f32 to vector<8x1xf32>
    %378 = arith.addf %376, %377 : vector<8x1xf32>
    %379 = math.rsqrt %378 : vector<8x1xf32>
    %380 = arith.mulf %288, %379 : vector<8x1xf32>
    %381 = arith.mulf %372, %380 : vector<8x1xf32>
    %382 = arith.subf %290, %381 : vector<8x1xf32>
    %383 = vector.broadcast %380 : vector<8x1xf32> to vector<8x20xf32>
    %384 = arith.mulf %350, %383 : vector<8x20xf32>
    %385 = vector.broadcast %382 : vector<8x1xf32> to vector<8x20xf32>
    %386 = arith.addf %384, %385 : vector<8x20xf32>
    %387 = vector.extract_strided_slice %266 {offsets = [0, 1], sizes = [8, 20], strides = [1, 1]} : vector<8x22xf32> to vector<8x20xf32>
    %388 = arith.addf %386, %387 : vector<8x20xf32>
    %cst_173 = arith.constant 0.000000e+00 : f32
    %389 = vector.broadcast %cst_173 : f32 to vector<8x20xf32>
    %390 = arith.maximumf %388, %389 : vector<8x20xf32>
    %391 = vector.broadcast %380 : vector<8x1xf32> to vector<8x20xf32>
    %392 = arith.mulf %354, %391 : vector<8x20xf32>
    %393 = vector.broadcast %382 : vector<8x1xf32> to vector<8x20xf32>
    %394 = arith.addf %392, %393 : vector<8x20xf32>
    %395 = vector.extract_strided_slice %274 {offsets = [0, 1], sizes = [8, 20], strides = [1, 1]} : vector<8x22xf32> to vector<8x20xf32>
    %396 = arith.addf %394, %395 : vector<8x20xf32>
    %cst_174 = arith.constant 0.000000e+00 : f32
    %397 = vector.broadcast %cst_174 : f32 to vector<8x20xf32>
    %398 = arith.maximumf %396, %397 : vector<8x20xf32>
    %c3 = arith.constant 3 : index
    %c0_175 = arith.constant 0 : index
    %c0_176 = arith.constant 0 : index
    %399 = vector.load %arg4[%c3, %c0_175, %c0_176] : memref<4x8x24xbf16, #tpu.memory_space<vmem>>, vector<1x8x24xbf16>
    %400 = vector.shape_cast %399 : vector<1x8x24xbf16> to vector<8x24xbf16>
    %c3_177 = arith.constant 3 : index
    %c0_178 = arith.constant 0 : index
    %c0_179 = arith.constant 0 : index
    %401 = vector.load %arg8[%c3_177, %c0_178, %c0_179] : memref<4x8x8xbf16, #tpu.memory_space<vmem>>, vector<1x8x8xbf16>
    %402 = vector.shape_cast %401 : vector<1x8x8xbf16> to vector<8x8xbf16>
    %c3_180 = arith.constant 3 : index
    %c0_181 = arith.constant 0 : index
    %c0_182 = arith.constant 0 : index
    %403 = vector.load %arg5[%c3_180, %c0_181, %c0_182] : memref<4x8x1xf32, #tpu.memory_space<vmem>>, vector<1x8x1xf32>
    %404 = vector.shape_cast %403 : vector<1x8x1xf32> to vector<8x1xf32>
    %c3_183 = arith.constant 3 : index
    %c0_184 = arith.constant 0 : index
    %c0_185 = arith.constant 0 : index
    %405 = vector.load %arg6[%c3_183, %c0_184, %c0_185] : memref<4x8x1xf32, #tpu.memory_space<vmem>>, vector<1x8x1xf32>
    %406 = vector.shape_cast %405 : vector<1x8x1xf32> to vector<8x1xf32>
    %c3_186 = arith.constant 3 : index
    %c0_187 = arith.constant 0 : index
    %c0_188 = arith.constant 0 : index
    %407 = vector.load %arg7[%c3_186, %c0_187, %c0_188] : memref<4x8x1xf32, #tpu.memory_space<vmem>>, vector<1x8x1xf32>
    %408 = vector.shape_cast %407 : vector<1x8x1xf32> to vector<8x1xf32>
    %c3_189 = arith.constant 3 : index
    %c0_190 = arith.constant 0 : index
    %c0_191 = arith.constant 0 : index
    %409 = vector.load %arg9[%c3_189, %c0_190, %c0_191] : memref<4x8x1xf32, #tpu.memory_space<vmem>>, vector<1x8x1xf32>
    %410 = vector.shape_cast %409 : vector<1x8x1xf32> to vector<8x1xf32>
    %c3_192 = arith.constant 3 : index
    %c0_193 = arith.constant 0 : index
    %c0_194 = arith.constant 0 : index
    %411 = vector.load %arg10[%c3_192, %c0_193, %c0_194] : memref<4x8x1xf32, #tpu.memory_space<vmem>>, vector<1x8x1xf32>
    %412 = vector.shape_cast %411 : vector<1x8x1xf32> to vector<8x1xf32>
    %c3_195 = arith.constant 3 : index
    %c0_196 = arith.constant 0 : index
    %c0_197 = arith.constant 0 : index
    %413 = vector.load %arg11[%c3_195, %c0_196, %c0_197] : memref<4x8x1xf32, #tpu.memory_space<vmem>>, vector<1x8x1xf32>
    %414 = vector.shape_cast %413 : vector<1x8x1xf32> to vector<8x1xf32>
    %415 = vector.extract_strided_slice %390 {offsets = [0, 0], sizes = [8, 16], strides = [1, 1]} : vector<8x20xf32> to vector<8x16xf32>
    %416 = vector.extract_strided_slice %390 {offsets = [0, 2], sizes = [8, 16], strides = [1, 1]} : vector<8x20xf32> to vector<8x16xf32>
    %417 = vector.extract_strided_slice %390 {offsets = [0, 4], sizes = [8, 16], strides = [1, 1]} : vector<8x20xf32> to vector<8x16xf32>
    %418 = tpu.concatenate %415, %416, %417 in 0 : vector<8x16xf32>, vector<8x16xf32>, vector<8x16xf32> -> vector<24x16xf32>
    %419 = arith.truncf %418 : vector<24x16xf32> to vector<24x16xbf16>
    %cst_198 = arith.constant dense<0.000000e+00> : vector<8x16xf32>
    %420 = tpu.matmul %400, %419, %cst_198 {dimension_numbers = #tpu.dot_dimension_numbers<[1], [0], [0], [1], [0, 0, 1, 1], [], []>} : vector<8x24xbf16>, vector<24x16xbf16>, vector<8x16xf32> -> vector<8x16xf32>
    %421 = vector.broadcast %404 : vector<8x1xf32> to vector<8x16xf32>
    %422 = arith.addf %420, %421 : vector<8x16xf32>
    %423 = vector.extract_strided_slice %398 {offsets = [0, 0], sizes = [8, 16], strides = [1, 1]} : vector<8x20xf32> to vector<8x16xf32>
    %424 = vector.extract_strided_slice %398 {offsets = [0, 2], sizes = [8, 16], strides = [1, 1]} : vector<8x20xf32> to vector<8x16xf32>
    %425 = vector.extract_strided_slice %398 {offsets = [0, 4], sizes = [8, 16], strides = [1, 1]} : vector<8x20xf32> to vector<8x16xf32>
    %426 = tpu.concatenate %423, %424, %425 in 0 : vector<8x16xf32>, vector<8x16xf32>, vector<8x16xf32> -> vector<24x16xf32>
    %427 = arith.truncf %426 : vector<24x16xf32> to vector<24x16xbf16>
    %cst_199 = arith.constant dense<0.000000e+00> : vector<8x16xf32>
    %428 = tpu.matmul %400, %427, %cst_199 {dimension_numbers = #tpu.dot_dimension_numbers<[1], [0], [0], [1], [0, 0, 1, 1], [], []>} : vector<8x24xbf16>, vector<24x16xbf16>, vector<8x16xf32> -> vector<8x16xf32>
    %429 = vector.broadcast %404 : vector<8x1xf32> to vector<8x16xf32>
    %430 = arith.addf %428, %429 : vector<8x16xf32>
    %cst_200 = arith.constant dense<0.000000e+00> : vector<8xf32>
    %431 = vector.multi_reduction <add>, %422, %cst_200 [1] : vector<8x16xf32> to vector<8xf32>
    %432 = vector.shape_cast %431 : vector<8xf32> to vector<8x1xf32>
    %cst_201 = arith.constant 0.000000e+00 : f32
    %433 = vector.broadcast %cst_201 : f32 to vector<8x1xf32>
    %434 = arith.addf %433, %432 : vector<8x1xf32>
    %cst_202 = arith.constant dense<0.000000e+00> : vector<8xf32>
    %435 = vector.multi_reduction <add>, %430, %cst_202 [1] : vector<8x16xf32> to vector<8xf32>
    %436 = vector.shape_cast %435 : vector<8xf32> to vector<8x1xf32>
    %437 = arith.addf %434, %436 : vector<8x1xf32>
    %438 = arith.mulf %422, %422 : vector<8x16xf32>
    %cst_203 = arith.constant dense<0.000000e+00> : vector<8xf32>
    %439 = vector.multi_reduction <add>, %438, %cst_203 [1] : vector<8x16xf32> to vector<8xf32>
    %440 = vector.shape_cast %439 : vector<8xf32> to vector<8x1xf32>
    %cst_204 = arith.constant 0.000000e+00 : f32
    %441 = vector.broadcast %cst_204 : f32 to vector<8x1xf32>
    %442 = arith.addf %441, %440 : vector<8x1xf32>
    %443 = arith.mulf %430, %430 : vector<8x16xf32>
    %cst_205 = arith.constant dense<0.000000e+00> : vector<8xf32>
    %444 = vector.multi_reduction <add>, %443, %cst_205 [1] : vector<8x16xf32> to vector<8xf32>
    %445 = vector.shape_cast %444 : vector<8xf32> to vector<8x1xf32>
    %446 = arith.addf %442, %445 : vector<8x1xf32>
    %cst_206 = arith.constant 3.125000e-02 : f32
    %447 = vector.broadcast %cst_206 : f32 to vector<8x1xf32>
    %448 = arith.mulf %437, %447 : vector<8x1xf32>
    %cst_207 = arith.constant 3.125000e-02 : f32
    %449 = vector.broadcast %cst_207 : f32 to vector<8x1xf32>
    %450 = arith.mulf %446, %449 : vector<8x1xf32>
    %451 = arith.mulf %448, %448 : vector<8x1xf32>
    %452 = arith.subf %450, %451 : vector<8x1xf32>
    %cst_208 = arith.constant 9.99999974E-6 : f32
    %453 = vector.broadcast %cst_208 : f32 to vector<8x1xf32>
    %454 = arith.addf %452, %453 : vector<8x1xf32>
    %455 = math.rsqrt %454 : vector<8x1xf32>
    %456 = arith.mulf %406, %455 : vector<8x1xf32>
    %457 = arith.mulf %448, %456 : vector<8x1xf32>
    %458 = arith.subf %408, %457 : vector<8x1xf32>
    %459 = vector.broadcast %456 : vector<8x1xf32> to vector<8x16xf32>
    %460 = arith.mulf %422, %459 : vector<8x16xf32>
    %461 = vector.broadcast %458 : vector<8x1xf32> to vector<8x16xf32>
    %462 = arith.addf %460, %461 : vector<8x16xf32>
    %cst_209 = arith.constant 0.000000e+00 : f32
    %463 = vector.broadcast %cst_209 : f32 to vector<8x16xf32>
    %464 = arith.maximumf %462, %463 : vector<8x16xf32>
    %465 = vector.broadcast %456 : vector<8x1xf32> to vector<8x16xf32>
    %466 = arith.mulf %430, %465 : vector<8x16xf32>
    %467 = vector.broadcast %458 : vector<8x1xf32> to vector<8x16xf32>
    %468 = arith.addf %466, %467 : vector<8x16xf32>
    %cst_210 = arith.constant 0.000000e+00 : f32
    %469 = vector.broadcast %cst_210 : f32 to vector<8x16xf32>
    %470 = arith.maximumf %468, %469 : vector<8x16xf32>
    %471 = arith.truncf %464 : vector<8x16xf32> to vector<8x16xbf16>
    %cst_211 = arith.constant dense<0.000000e+00> : vector<8x16xf32>
    %472 = tpu.matmul %402, %471, %cst_211 {dimension_numbers = #tpu.dot_dimension_numbers<[1], [0], [0], [1], [0, 0, 1, 1], [], []>} : vector<8x8xbf16>, vector<8x16xbf16>, vector<8x16xf32> -> vector<8x16xf32>
    %473 = vector.broadcast %410 : vector<8x1xf32> to vector<8x16xf32>
    %474 = arith.addf %472, %473 : vector<8x16xf32>
    %475 = arith.truncf %470 : vector<8x16xf32> to vector<8x16xbf16>
    %cst_212 = arith.constant dense<0.000000e+00> : vector<8x16xf32>
    %476 = tpu.matmul %402, %475, %cst_212 {dimension_numbers = #tpu.dot_dimension_numbers<[1], [0], [0], [1], [0, 0, 1, 1], [], []>} : vector<8x8xbf16>, vector<8x16xbf16>, vector<8x16xf32> -> vector<8x16xf32>
    %477 = vector.broadcast %410 : vector<8x1xf32> to vector<8x16xf32>
    %478 = arith.addf %476, %477 : vector<8x16xf32>
    %cst_213 = arith.constant dense<0.000000e+00> : vector<8xf32>
    %479 = vector.multi_reduction <add>, %474, %cst_213 [1] : vector<8x16xf32> to vector<8xf32>
    %480 = vector.shape_cast %479 : vector<8xf32> to vector<8x1xf32>
    %cst_214 = arith.constant 0.000000e+00 : f32
    %481 = vector.broadcast %cst_214 : f32 to vector<8x1xf32>
    %482 = arith.addf %481, %480 : vector<8x1xf32>
    %cst_215 = arith.constant dense<0.000000e+00> : vector<8xf32>
    %483 = vector.multi_reduction <add>, %478, %cst_215 [1] : vector<8x16xf32> to vector<8xf32>
    %484 = vector.shape_cast %483 : vector<8xf32> to vector<8x1xf32>
    %485 = arith.addf %482, %484 : vector<8x1xf32>
    %486 = arith.mulf %474, %474 : vector<8x16xf32>
    %cst_216 = arith.constant dense<0.000000e+00> : vector<8xf32>
    %487 = vector.multi_reduction <add>, %486, %cst_216 [1] : vector<8x16xf32> to vector<8xf32>
    %488 = vector.shape_cast %487 : vector<8xf32> to vector<8x1xf32>
    %cst_217 = arith.constant 0.000000e+00 : f32
    %489 = vector.broadcast %cst_217 : f32 to vector<8x1xf32>
    %490 = arith.addf %489, %488 : vector<8x1xf32>
    %491 = arith.mulf %478, %478 : vector<8x16xf32>
    %cst_218 = arith.constant dense<0.000000e+00> : vector<8xf32>
    %492 = vector.multi_reduction <add>, %491, %cst_218 [1] : vector<8x16xf32> to vector<8xf32>
    %493 = vector.shape_cast %492 : vector<8xf32> to vector<8x1xf32>
    %494 = arith.addf %490, %493 : vector<8x1xf32>
    %cst_219 = arith.constant 3.125000e-02 : f32
    %495 = vector.broadcast %cst_219 : f32 to vector<8x1xf32>
    %496 = arith.mulf %485, %495 : vector<8x1xf32>
    %cst_220 = arith.constant 3.125000e-02 : f32
    %497 = vector.broadcast %cst_220 : f32 to vector<8x1xf32>
    %498 = arith.mulf %494, %497 : vector<8x1xf32>
    %499 = arith.mulf %496, %496 : vector<8x1xf32>
    %500 = arith.subf %498, %499 : vector<8x1xf32>
    %cst_221 = arith.constant 9.99999974E-6 : f32
    %501 = vector.broadcast %cst_221 : f32 to vector<8x1xf32>
    %502 = arith.addf %500, %501 : vector<8x1xf32>
    %503 = math.rsqrt %502 : vector<8x1xf32>
    %504 = arith.mulf %412, %503 : vector<8x1xf32>
    %505 = arith.mulf %496, %504 : vector<8x1xf32>
    %506 = arith.subf %414, %505 : vector<8x1xf32>
    %507 = vector.broadcast %504 : vector<8x1xf32> to vector<8x16xf32>
    %508 = arith.mulf %474, %507 : vector<8x16xf32>
    %509 = vector.broadcast %506 : vector<8x1xf32> to vector<8x16xf32>
    %510 = arith.addf %508, %509 : vector<8x16xf32>
    %511 = vector.extract_strided_slice %390 {offsets = [0, 2], sizes = [8, 16], strides = [1, 1]} : vector<8x20xf32> to vector<8x16xf32>
    %512 = arith.addf %510, %511 : vector<8x16xf32>
    %cst_222 = arith.constant 0.000000e+00 : f32
    %513 = vector.broadcast %cst_222 : f32 to vector<8x16xf32>
    %514 = arith.maximumf %512, %513 : vector<8x16xf32>
    %515 = vector.broadcast %504 : vector<8x1xf32> to vector<8x16xf32>
    %516 = arith.mulf %478, %515 : vector<8x16xf32>
    %517 = vector.broadcast %506 : vector<8x1xf32> to vector<8x16xf32>
    %518 = arith.addf %516, %517 : vector<8x16xf32>
    %519 = vector.extract_strided_slice %398 {offsets = [0, 2], sizes = [8, 16], strides = [1, 1]} : vector<8x20xf32> to vector<8x16xf32>
    %520 = arith.addf %518, %519 : vector<8x16xf32>
    %cst_223 = arith.constant 0.000000e+00 : f32
    %521 = vector.broadcast %cst_223 : f32 to vector<8x16xf32>
    %522 = arith.maximumf %520, %521 : vector<8x16xf32>
    %c0_224 = arith.constant 0 : index
    %c0_225 = arith.constant 0 : index
    %523 = vector.load %arg12[%c0_224, %c0_225] : memref<8x32xf32, #tpu.memory_space<vmem>>, vector<8x16xf32>
    tpu.vector_store %arg12[%c0_224, %c0_225], %514 {strides = array<i32>} : memref<8x32xf32, #tpu.memory_space<vmem>>, vector<8x16xf32>,
    %c0_226 = arith.constant 0 : index
    %c16 = arith.constant 16 : index
    %524 = vector.load %arg12[%c0_226, %c16] : memref<8x32xf32, #tpu.memory_space<vmem>>, vector<8x16xf32>
    tpu.vector_store %arg12[%c0_226, %c16], %522 {strides = array<i32>} : memref<8x32xf32, #tpu.memory_space<vmem>>, vector<8x16xf32>,
    return
  }
  func.func @transform_0(%arg0: i32) -> (i32, i32, i32) {
    %c0_i32 = arith.constant 0 : i32
    %c0_i32_0 = arith.constant 0 : i32
    %c0_i32_1 = arith.constant 0 : i32
    %c0_i32_2 = arith.constant 0 : i32
    return %c0_i32, %c0_i32_0, %c0_i32_1 : i32, i32, i32
  }
  func.func @transform_1(%arg0: i32) -> (i32, i32) {
    %c0_i32 = arith.constant 0 : i32
    %c0_i32_0 = arith.constant 0 : i32
    %c0_i32_1 = arith.constant 0 : i32
    return %c0_i32, %c0_i32_0 : i32, i32
  }
  func.func @transform_2(%arg0: i32) -> (i32, i32) {
    %c0_i32 = arith.constant 0 : i32
    %c0_i32_0 = arith.constant 0 : i32
    %c0_i32_1 = arith.constant 0 : i32
    return %c0_i32, %c0_i32_0 : i32, i32
  }
  func.func @transform_3(%arg0: i32) -> (i32, i32, i32) {
    %c0_i32 = arith.constant 0 : i32
    %c0_i32_0 = arith.constant 0 : i32
    %c0_i32_1 = arith.constant 0 : i32
    %c0_i32_2 = arith.constant 0 : i32
    return %c0_i32, %c0_i32_0, %c0_i32_1 : i32, i32, i32
  }
  func.func @transform_4(%arg0: i32) -> (i32, i32, i32) {
    %c0_i32 = arith.constant 0 : i32
    %c0_i32_0 = arith.constant 0 : i32
    %c0_i32_1 = arith.constant 0 : i32
    %c0_i32_2 = arith.constant 0 : i32
    return %c0_i32, %c0_i32_0, %c0_i32_1 : i32, i32, i32
  }
  func.func @transform_5(%arg0: i32) -> (i32, i32, i32) {
    %c0_i32 = arith.constant 0 : i32
    %c0_i32_0 = arith.constant 0 : i32
    %c0_i32_1 = arith.constant 0 : i32
    %c0_i32_2 = arith.constant 0 : i32
    return %c0_i32, %c0_i32_0, %c0_i32_1 : i32, i32, i32
  }
  func.func @transform_6(%arg0: i32) -> (i32, i32, i32) {
    %c0_i32 = arith.constant 0 : i32
    %c0_i32_0 = arith.constant 0 : i32
    %c0_i32_1 = arith.constant 0 : i32
    %c0_i32_2 = arith.constant 0 : i32
    return %c0_i32, %c0_i32_0, %c0_i32_1 : i32, i32, i32
  }
  func.func @transform_7(%arg0: i32) -> (i32, i32, i32) {
    %c0_i32 = arith.constant 0 : i32
    %c0_i32_0 = arith.constant 0 : i32
    %c0_i32_1 = arith.constant 0 : i32
    %c0_i32_2 = arith.constant 0 : i32
    return %c0_i32, %c0_i32_0, %c0_i32_1 : i32, i32, i32
  }
  func.func @transform_8(%arg0: i32) -> (i32, i32, i32) {
    %c0_i32 = arith.constant 0 : i32
    %c0_i32_0 = arith.constant 0 : i32
    %c0_i32_1 = arith.constant 0 : i32
    %c0_i32_2 = arith.constant 0 : i32
    return %c0_i32, %c0_i32_0, %c0_i32_1 : i32, i32, i32
  }
  func.func @transform_9(%arg0: i32) -> (i32, i32, i32) {
    %c0_i32 = arith.constant 0 : i32
    %c0_i32_0 = arith.constant 0 : i32
    %c0_i32_1 = arith.constant 0 : i32
    %c0_i32_2 = arith.constant 0 : i32
    return %c0_i32, %c0_i32_0, %c0_i32_1 : i32, i32, i32
  }
  func.func @transform_10(%arg0: i32) -> (i32, i32, i32) {
    %c0_i32 = arith.constant 0 : i32
    %c0_i32_0 = arith.constant 0 : i32
    %c0_i32_1 = arith.constant 0 : i32
    %c0_i32_2 = arith.constant 0 : i32
    return %c0_i32, %c0_i32_0, %c0_i32_1 : i32, i32, i32
  }
  func.func @transform_11(%arg0: i32) -> (i32, i32) {
    %c0_i32 = arith.constant 0 : i32
    %c0_i32_0 = arith.constant 0 : i32
    %c0_i32_1 = arith.constant 0 : i32
    return %c0_i32, %c0_i32_0 : i32, i32
  }
}

</mosaic_0001>

<llo_original>
// kernel: tpu_custom_call.1
$region0: #{tpu_custom_call.1}
  #allocation0 [shape = 'u32[]', space=smem, size = 0x4, offset = 0x4, fixed_abs, tag = 'smem constant byte address 0x4 - core index']
  #allocation1 [shape = 'u32[144,128]{1,0:T(1,128)}', space=vmem, size = 0x12000, scoped, tag = 'internal scratch']
  #allocation2 [shape = 'f32[2,4,28]{2,1,0:T(4,128)}', space=vmem, size = 0x1000, scoped, tag = 'scratch operand']
  %s0 = inlined_call_operand.vmem [shape: f32[2,4,16], index: 0, kind: input, shape index: {}]
  %s1 = inlined_call_operand.vmem [shape: bf16[8,4], index: 1, kind: input, shape index: {}]
  %s2 = inlined_call_operand.vmem [shape: f32[8,1], index: 2, kind: input, shape index: {}]
  %s3 = inlined_call_operand.vmem [shape: bf16[4,8,24], index: 3, kind: input, shape index: {}]
  %s4 = inlined_call_operand.vmem [shape: f32[4,8,1], index: 4, kind: input, shape index: {}]
  %s5 = inlined_call_operand.vmem [shape: f32[4,8,1], index: 5, kind: input, shape index: {}]
  %s6 = inlined_call_operand.vmem [shape: f32[4,8,1], index: 6, kind: input, shape index: {}]
  %s7 = inlined_call_operand.vmem [shape: bf16[4,8,8], index: 7, kind: input, shape index: {}]
  %s8 = inlined_call_operand.vmem [shape: f32[4,8,1], index: 8, kind: input, shape index: {}]
  %s9 = inlined_call_operand.vmem [shape: f32[4,8,1], index: 9, kind: input, shape index: {}]
  %s10 = inlined_call_operand.vmem [shape: f32[4,8,1], index: 10, kind: input, shape index: {}]
  %s11 = inlined_call_operand.hbm [shape: f32[8,32], index: 11, kind: output, shape index: {}]
  %s12 = sld [smem:[#allocation0]]
  $region54: #{tpu_custom_call.1} parent=0
    _
  %s14 = ssub.s32 1, %s12
  %s15 = scalar_select 0, %s14, %s12
  $region1: #{tpu_custom_call.1} parent=0
    #allocation3 [shape = 'u8[4096]{0}', space=vmem, size = 0x1000, scoped, tag = 'output window, operand 0, single buffered']
    #allocation4 [shape = 's32[1]{0}', space=sflag, size = 0x4, scoped, tag = 'scoped memory for tpu_custom_call.1']
    %16 = vsyncpa [#allocation4], 0
    // Predicated region
    $region2: #{tpu_custom_call.1} parent=1 // pred_check
      _
    $region3: #{tpu_custom_call.1} parent=1 // pred_check_branch
      %18 = sbr.rel (0) target = $region5
    $region4: #{tpu_custom_call.1} parent=1 // pred_region
      _
    $region5: #{tpu_custom_call.1} parent=1 // pred_fallthru
      _
    // Predicated region
    $region6: #{tpu_custom_call.1} parent=1 // pred_check
      _
    $region7: #{tpu_custom_call.1} parent=1 // pred_check_branch
      %20 = sbr.rel (0) target = $region9
    $region8: #{tpu_custom_call.1} parent=1 // pred_region
      _
    $region9: #{tpu_custom_call.1} parent=1 // pred_fallthru
      _
    // Predicated region
    $region10: #{tpu_custom_call.1} parent=1 // pred_check
      _
    $region11: #{tpu_custom_call.1} parent=1 // pred_check_branch
      %22 = sbr.rel (0) target = $region13
    $region12: #{tpu_custom_call.1} parent=1 // pred_region
      _
    $region13: #{tpu_custom_call.1} parent=1 // pred_fallthru
      _
    // Predicated region
    $region14: #{tpu_custom_call.1} parent=1 // pred_check
      _
    $region15: #{tpu_custom_call.1} parent=1 // pred_check_branch
      %24 = sbr.rel (0) target = $region17
    $region16: #{tpu_custom_call.1} parent=1 // pred_region
      _
    $region17: #{tpu_custom_call.1} parent=1 // pred_fallthru
      _
    // Predicated region
    $region18: #{tpu_custom_call.1} parent=1 // pred_check
      _
    $region19: #{tpu_custom_call.1} parent=1 // pred_check_branch
      %26 = sbr.rel (0) target = $region21
    $region20: #{tpu_custom_call.1} parent=1 // pred_region
      _
    $region21: #{tpu_custom_call.1} parent=1 // pred_fallthru
      _
    // Predicated region
    $region22: #{tpu_custom_call.1} parent=1 // pred_check
      _
    $region23: #{tpu_custom_call.1} parent=1 // pred_check_branch
      %28 = sbr.rel (0) target = $region25
    $region24: #{tpu_custom_call.1} parent=1 // pred_region
      _
    $region25: #{tpu_custom_call.1} parent=1 // pred_fallthru
      _
    // Predicated region
    $region26: #{tpu_custom_call.1} parent=1 // pred_check
      _
    $region27: #{tpu_custom_call.1} parent=1 // pred_check_branch
      %30 = sbr.rel (0) target = $region29
    $region28: #{tpu_custom_call.1} parent=1 // pred_region
      _
    $region29: #{tpu_custom_call.1} parent=1 // pred_fallthru
      _
    // Predicated region
    $region30: #{tpu_custom_call.1} parent=1 // pred_check
      _
    $region31: #{tpu_custom_call.1} parent=1 // pred_check_branch
      %32 = sbr.rel (0) target = $region33
    $region32: #{tpu_custom_call.1} parent=1 // pred_region
      _
    $region33: #{tpu_custom_call.1} parent=1 // pred_fallthru
      _
    // Predicated region
    $region34: #{tpu_custom_call.1} parent=1 // pred_check
      _
    $region35: #{tpu_custom_call.1} parent=1 // pred_check_branch
      %34 = sbr.rel (0) target = $region37
    $region36: #{tpu_custom_call.1} parent=1 // pred_region
      _
    $region37: #{tpu_custom_call.1} parent=1 // pred_fallthru
      _
    // Predicated region
    $region38: #{tpu_custom_call.1} parent=1 // pred_check
      _
    $region39: #{tpu_custom_call.1} parent=1 // pred_check_branch
      %36 = sbr.rel (0) target = $region41
    $region40: #{tpu_custom_call.1} parent=1 // pred_region
      _
    $region41: #{tpu_custom_call.1} parent=1 // pred_fallthru
      _
    // Predicated region
    $region42: #{tpu_custom_call.1} parent=1 // pred_check
      _
    $region43: #{tpu_custom_call.1} parent=1 // pred_check_branch
      %38 = sbr.rel (0) target = $region45
    $region44: #{tpu_custom_call.1} parent=1 // pred_region
      _
    $region45: #{tpu_custom_call.1} parent=1 // pred_fallthru
      _
    %vm40 = vcmask 224256
    %41 = vst.msk [vmem:[#allocation2] sm:$0xf] %vm40, 0.0
    %42 = vst.msk [vmem:[#allocation2 + $0x4] sm:$0xf] %vm40, 0.0
    %v43 = vld [vmem:[%s0] sm:$0xf]
    %45 = vrot.lane.b32.xlu0 %v43, 6
    %v46 = vpop.permute.xlu0 %45
    %vm48 = vcmask 175152
    %49 = vst.msk [vmem:[#allocation2] sm:$0xf] %vm48, %v46
    %s50 = scalar_lea.vmem %s0, 4
    %v51 = vld [vmem:[%s50] sm:$0xf]
    %53 = vrot.lane.b32.xlu0 %v51, 6
    %v54 = vpop.permute.xlu0 %53
    %s56 = scalar_lea.vmem [#allocation2], 4
    %57 = vst.msk [vmem:[%s56] sm:$0xf] %vm48, %v54
    %v58 = vld [vmem:[%s2] sm:$0xff]
    %v59 = vld [vmem:[%s1] sm:$0xf]
    %v60 = vld [vmem:[#allocation2] sm:$0xf]
    %v61 = vpack.c.bf16 %v60, %v60
    %63 = vset.pattern.permute.xlu0 0
    %64 = vperm.xlu0 %63, %v58
    %v65 = vpop.permute.xlu0 %64
    %vm67 = vcmask 31744
    %v69 = vsel %vm67, %v59, 0
    %vm71 = vcmask 1041408
    %v73 = vsel %vm71, %v61, 0
    %75 = vmatprep.subr.bf16.mxu0 0
    %76 = vmatpush1.bf16.msra.mxu0 %v73
    %77 = vmatprep.subr.bf16.mxu0 0
    %78 = vmatpush1.bf16.msra.mxu0 0
    %79 = vmatprep.subr.bf16.mxu0 0
    %80 = vmatpush1.bf16.msra.mxu0 0
    %81 = vmatprep.subr.bf16.mxu0 0
    %82 = vmatpush1.bf16.msra.mxu0 0
    %83 = vmatprep.subr.bf16.mxu0 0
    %84 = vmatpush1.bf16.msra.mxu0 0
    %85 = vmatprep.subr.bf16.mxu0 0
    %86 = vmatpush1.bf16.msra.mxu0 0
    %87 = vmatprep.subr.bf16.mxu0 0
    %88 = vmatpush1.bf16.msra.mxu0 0
    %89 = vmatprep.subr.bf16.mxu0 0
    %90 = vmatpush1.bf16.msra.mxu0 0
    %91 = vmatprep.subr.bf16.mxu0 0
    %92 = vmatpush1.bf16.msra.mxu0 0
    %93 = vmatprep.subr.bf16.mxu0 0
    %94 = vmatpush1.bf16.msra.mxu0 0
    %95 = vmatprep.subr.bf16.mxu0 0
    %96 = vmatpush1.bf16.msra.mxu0 0
    %97 = vmatprep.subr.bf16.mxu0 0
    %98 = vmatpush1.bf16.msra.mxu0 0
    %99 = vmatprep.subr.bf16.mxu0 0
    %100 = vmatpush1.bf16.msra.mxu0 0
    %101 = vmatprep.subr.bf16.mxu0 0
    %102 = vmatpush1.bf16.msra.mxu0 0
    %103 = vmatprep.subr.bf16.mxu0 0
    %104 = vmatpush1.bf16.msra.mxu0 0
    %105 = vmatprep.subr.bf16.mxu0 0
    %106 = vmatpush1.bf16.msra.mxu0 0
    %107 = vmatprep.mubr.bf16.mxu0 0
    %108 = vmatmul.mubr.bf16.gmra.mrb[0].mxu0 %v69
    %v109 = vpop.f32.mrb[0].mxu0
    %v110 = vadd.f32 %v65, %v109
    %v111 = vpop.f32.mrb[0].mxu0
    %v112 = vpop.f32.mrb[0].mxu0
    %v113 = vpop.f32.mrb[0].mxu0
    %114 = vdwg.mxu0
    %v115 = vld [vmem:[%s56] sm:$0xf]
    %v116 = vpack.c.bf16 %v115, %v115
    %v118 = vsel %vm71, %v116, 0
    %120 = vmatprep.subr.bf16.mxu0 0
    %121 = vmatpush1.bf16.msra.mxu0 %v118
    %122 = vmatprep.subr.bf16.mxu0 0
    %123 = vmatpush1.bf16.msra.mxu0 0
    %124 = vmatprep.subr.bf16.mxu0 0
    %125 = vmatpush1.bf16.msra.mxu0 0
    %126 = vmatprep.subr.bf16.mxu0 0
    %127 = vmatpush1.bf16.msra.mxu0 0
    %128 = vmatprep.subr.bf16.mxu0 0
    %129 = vmatpush1.bf16.msra.mxu0 0
    %130 = vmatprep.subr.bf16.mxu0 0
    %131 = vmatpush1.bf16.msra.mxu0 0
    %132 = vmatprep.subr.bf16.mxu0 0
    %133 = vmatpush1.bf16.msra.mxu0 0
    %134 = vmatprep.subr.bf16.mxu0 0
    %135 = vmatpush1.bf16.msra.mxu0 0
    %136 = vmatprep.subr.bf16.mxu0 0
    %137 = vmatpush1.bf16.msra.mxu0 0
    %138 = vmatprep.subr.bf16.mxu0 0
    %139 = vmatpush1.bf16.msra.mxu0 0
    %140 = vmatprep.subr.bf16.mxu0 0
    %141 = vmatpush1.bf16.msra.mxu0 0
    %142 = vmatprep.subr.bf16.mxu0 0
    %143 = vmatpush1.bf16.msra.mxu0 0
    %144 = vmatprep.subr.bf16.mxu0 0
    %145 = vmatpush1.bf16.msra.mxu0 0
    %146 = vmatprep.subr.bf16.mxu0 0
    %147 = vmatpush1.bf16.msra.mxu0 0
    %148 = vmatprep.subr.bf16.mxu0 0
    %149 = vmatpush1.bf16.msra.mxu0 0
    %150 = vmatprep.subr.bf16.mxu0 0
    %151 = vmatpush1.bf16.msra.mxu0 0
    %152 = vmatprep.mubr.bf16.mxu0 0
    %153 = vmatmul.mubr.bf16.gmra.mrb[0].mxu0 %v69
    %v154 = vpop.f32.mrb[0].mxu0
    %v155 = vadd.f32 %v65, %v154
    %v156 = vpop.f32.mrb[0].mxu0
    %v157 = vpop.f32.mrb[0].mxu0
    %v158 = vpop.f32.mrb[0].mxu0
    %159 = vdwg.mxu0
    %v160 = vld [vmem:[%s3] sm:$0xf]
    %v161 = vld [vmem:[%s7] sm:$0xf]
    %v162 = vld [vmem:[%s4] sm:$0xff]
    %v163 = vld [vmem:[%s5] sm:$0xff]
    %v164 = vld [vmem:[%s6] sm:$0xff]
    %v165 = vld [vmem:[%s8] sm:$0xff]
    %v166 = vld [vmem:[%s9] sm:$0xff]
    %v167 = vld [vmem:[%s10] sm:$0xff]
    %169 = vrot.lane.b32.xlu0 %v110, 127
    %v170 = vpop.permute.xlu0 %169
    %172 = vrot.lane.b32.xlu0 %v110, 126
    %v173 = vpop.permute.xlu0 %172
    %v175 = vpack.c.bf16 %v170, %v110
    %v176 = vpack.c.bf16 %v173, %v173
    %178 = vset.pattern.permute.xlu0 0
    %179 = vperm.xlu0 %178, %v162
    %v180 = vpop.permute.xlu0 %179
    %vm182 = vcmask 195584
    %v184 = vsel %vm182, %v160, 0
    %vm186 = vcmask 1043456
    %v188 = vsel %vm186, %v176, 0
    %190 = vmatprep.subr.bf16.mxu0 0
    %191 = vmatpush1.bf16.msra.mxu0 %v175
    %192 = vmatprep.subr.bf16.mxu0 0
    %193 = vmatpush1.bf16.msra.mxu0 %v188
    %194 = vmatprep.subr.bf16.mxu0 0
    %195 = vmatpush1.bf16.msra.mxu0 0
    %196 = vmatprep.subr.bf16.mxu0 0
    %197 = vmatpush1.bf16.msra.mxu0 0
    %198 = vmatprep.subr.bf16.mxu0 0
    %199 = vmatpush1.bf16.msra.mxu0 0
    %200 = vmatprep.subr.bf16.mxu0 0
    %201 = vmatpush1.bf16.msra.mxu0 0
    %202 = vmatprep.subr.bf16.mxu0 0
    %203 = vmatpush1.bf16.msra.mxu0 0
    %204 = vmatprep.subr.bf16.mxu0 0
    %205 = vmatpush1.bf16.msra.mxu0 0
    %206 = vmatprep.subr.bf16.mxu0 0
    %207 = vmatpush1.bf16.msra.mxu0 0
    %208 = vmatprep.subr.bf16.mxu0 0
    %209 = vmatpush1.bf16.msra.mxu0 0
    %210 = vmatprep.subr.bf16.mxu0 0
    %211 = vmatpush1.bf16.msra.mxu0 0
    %212 = vmatprep.subr.bf16.mxu0 0
    %213 = vmatpush1.bf16.msra.mxu0 0
    %214 = vmatprep.subr.bf16.mxu0 0
    %215 = vmatpush1.bf16.msra.mxu0 0
    %216 = vmatprep.subr.bf16.mxu0 0
    %217 = vmatpush1.bf16.msra.mxu0 0
    %218 = vmatprep.subr.bf16.mxu0 0
    %219 = vmatpush1.bf16.msra.mxu0 0
    %220 = vmatprep.subr.bf16.mxu0 0
    %221 = vmatpush1.bf16.msra.mxu0 0
    %222 = vmatprep.mubr.bf16.mxu0 0
    %223 = vmatmul.mubr.bf16.gmra.mrb[0].mxu0 %v184
    %v224 = vpop.f32.mrb[0].mxu0
    %v225 = vadd.f32 %v180, %v224
    %v226 = vpop.f32.mrb[0].mxu0
    %v227 = vpop.f32.mrb[0].mxu0
    %v228 = vpop.f32.mrb[0].mxu0
    %229 = vdwg.mxu0
    %231 = vrot.lane.b32.xlu0 %v155, 127
    %v232 = vpop.permute.xlu0 %231
    %234 = vrot.lane.b32.xlu0 %v155, 126
    %v235 = vpop.permute.xlu0 %234
    %v237 = vpack.c.bf16 %v232, %v155
    %v238 = vpack.c.bf16 %v235, %v235
    %v240 = vsel %vm186, %v238, 0
    %242 = vmatprep.subr.bf16.mxu0 0
    %243 = vmatpush1.bf16.msra.mxu0 %v237
    %244 = vmatprep.subr.bf16.mxu0 0
    %245 = vmatpush1.bf16.msra.mxu0 %v240
    %246 = vmatprep.subr.bf16.mxu0 0
    %247 = vmatpush1.bf16.msra.mxu0 0
    %248 = vmatprep.subr.bf16.mxu0 0
    %249 = vmatpush1.bf16.msra.mxu0 0
    %250 = vmatprep.subr.bf16.mxu0 0
    %251 = vmatpush1.bf16.msra.mxu0 0
    %252 = vmatprep.subr.bf16.mxu0 0
    %253 = vmatpush1.bf16.msra.mxu0 0
    %254 = vmatprep.subr.bf16.mxu0 0
    %255 = vmatpush1.bf16.msra.mxu0 0
    %256 = vmatprep.subr.bf16.mxu0 0
    %257 = vmatpush1.bf16.msra.mxu0 0
    %258 = vmatprep.subr.bf16.mxu0 0
    %259 = vmatpush1.bf16.msra.mxu0 0
    %260 = vmatprep.subr.bf16.mxu0 0
    %261 = vmatpush1.bf16.msra.mxu0 0
    %262 = vmatprep.subr.bf16.mxu0 0
    %263 = vmatpush1.bf16.msra.mxu0 0
    %264 = vmatprep.subr.bf16.mxu0 0
    %265 = vmatpush1.bf16.msra.mxu0 0
    %266 = vmatprep.subr.bf16.mxu0 0
    %267 = vmatpush1.bf16.msra.mxu0 0
    %268 = vmatprep.subr.bf16.mxu0 0
    %269 = vmatpush1.bf16.msra.mxu0 0
    %270 = vmatprep.subr.bf16.mxu0 0
    %271 = vmatpush1.bf16.msra.mxu0 0
    %272 = vmatprep.subr.bf16.mxu0 0
    %273 = vmatpush1.bf16.msra.mxu0 0
    %274 = vmatprep.mubr.bf16.mxu0 0
    %275 = vmatmul.mubr.bf16.gmra.mrb[0].mxu0 %v184
    %v276 = vpop.f32.mrb[0].mxu0
    %v277 = vadd.f32 %v180, %v276
    %v278 = vpop.f32.mrb[0].mxu0
    %v279 = vpop.f32.mrb[0].mxu0
    %v280 = vpop.f32.mrb[0].mxu0
    %281 = vdwg.mxu0
    %vm282 = vcmask 211968
    %v283 = vsel %vm282, %v225, 0.0
    %284 = vadd.xlane.f32.xlu0 %v283
    %v285 = vpop.xlane.xlu0 %284
    %v286 = vadd.f32 %v285, 0.0
    %v287 = vsel %vm282, %v277, 0.0
    %288 = vadd.xlane.f32.xlu0 %v287
    %v289 = vpop.xlane.xlu0 %288
    %v290 = vadd.f32 %v286, %v289
    %v291 = vmul.f32 %v225, %v225
    %v292 = vsel %vm282, %v291, 0.0
    %293 = vadd.xlane.f32.xlu0 %v292
    %v294 = vpop.xlane.xlu0 %293
    %v295 = vadd.f32 %v294, 0.0
    %v296 = vmul.f32 %v277, %v277
    %v297 = vsel %vm282, %v296, 0.0
    %298 = vadd.xlane.f32.xlu0 %v297
    %v299 = vpop.xlane.xlu0 %298
    %v300 = vadd.f32 %v295, %v299
    %v301 = vmul.f32 %v290, 0.01923077
    %v302 = vmul.f32 %v300, 0.01923077
    %v303 = vmul.f32 %v301, %v301
    %v304 = vsub.f32 %v302, %v303
    %v305 = vadd.f32 %v304, 1e-05
    %v306 = vrsqrt.pop %v305
    %v307 = vmul.f32 %v163, %v306
    %v308 = vmul.f32 %v301, %v307
    %v309 = vsub.f32 %v164, %v308
    %311 = vset.pattern.permute.xlu0 0
    %312 = vperm.xlu0 %311, %v307
    %v313 = vpop.permute.xlu0 %312
    %v315 = vmul.f32 %v225, %v313
    %317 = vset.pattern.permute.xlu0 0
    %318 = vperm.xlu0 %317, %v309
    %v319 = vpop.permute.xlu0 %318
    %v321 = vadd.f32 %v315, %v319
    %v322 = vmax.f32 %v321, 0.0
    %v323 = vmul.f32 %v277, %v313
    %v324 = vadd.f32 %v323, %v319
    %v325 = vmax.f32 %v324, 0.0
    %v326 = vpack.c.bf16 %v322, %v322
    %328 = vset.pattern.permute.xlu0 0
    %329 = vperm.xlu0 %328, %v165
    %v330 = vpop.permute.xlu0 %329
    %vm332 = vcmask 64512
    %v334 = vsel %vm332, %v161, 0
    %v337 = vsel %vm186, %v326, 0
    %339 = vmatprep.subr.bf16.mxu0 0
    %340 = vmatpush1.bf16.msra.mxu0 %v337
    %341 = vmatprep.subr.bf16.mxu0 0
    %342 = vmatpush1.bf16.msra.mxu0 0
    %343 = vmatprep.subr.bf16.mxu0 0
    %344 = vmatpush1.bf16.msra.mxu0 0
    %345 = vmatprep.subr.bf16.mxu0 0
    %346 = vmatpush1.bf16.msra.mxu0 0
    %347 = vmatprep.subr.bf16.mxu0 0
    %348 = vmatpush1.bf16.msra.mxu0 0
    %349 = vmatprep.subr.bf16.mxu0 0
    %350 = vmatpush1.bf16.msra.mxu0 0
    %351 = vmatprep.subr.bf16.mxu0 0
    %352 = vmatpush1.bf16.msra.mxu0 0
    %353 = vmatprep.subr.bf16.mxu0 0
    %354 = vmatpush1.bf16.msra.mxu0 0
    %355 = vmatprep.subr.bf16.mxu0 0
    %356 = vmatpush1.bf16.msra.mxu0 0
    %357 = vmatprep.subr.bf16.mxu0 0
    %358 = vmatpush1.bf16.msra.mxu0 0
    %359 = vmatprep.subr.bf16.mxu0 0
    %360 = vmatpush1.bf16.msra.mxu0 0
    %361 = vmatprep.subr.bf16.mxu0 0
    %362 = vmatpush1.bf16.msra.mxu0 0
    %363 = vmatprep.subr.bf16.mxu0 0
    %364 = vmatpush1.bf16.msra.mxu0 0
    %365 = vmatprep.subr.bf16.mxu0 0
    %366 = vmatpush1.bf16.msra.mxu0 0
    %367 = vmatprep.subr.bf16.mxu0 0
    %368 = vmatpush1.bf16.msra.mxu0 0
    %369 = vmatprep.subr.bf16.mxu0 0
    %370 = vmatpush1.bf16.msra.mxu0 0
    %371 = vmatprep.mubr.bf16.mxu0 0
    %372 = vmatmul.mubr.bf16.gmra.mrb[0].mxu0 %v334
    %v373 = vpop.f32.mrb[0].mxu0
    %v374 = vadd.f32 %v330, %v373
    %v375 = vpop.f32.mrb[0].mxu0
    %v376 = vpop.f32.mrb[0].mxu0
    %v377 = vpop.f32.mrb[0].mxu0
    %378 = vdwg.mxu0
    %v379 = vpack.c.bf16 %v325, %v325
    %v381 = vsel %vm186, %v379, 0
    %383 = vmatprep.subr.bf16.mxu0 0
    %384 = vmatpush1.bf16.msra.mxu0 %v381
    %385 = vmatprep.subr.bf16.mxu0 0
    %386 = vmatpush1.bf16.msra.mxu0 0
    %387 = vmatprep.subr.bf16.mxu0 0
    %388 = vmatpush1.bf16.msra.mxu0 0
    %389 = vmatprep.subr.bf16.mxu0 0
    %390 = vmatpush1.bf16.msra.mxu0 0
    %391 = vmatprep.subr.bf16.mxu0 0
    %392 = vmatpush1.bf16.msra.mxu0 0
    %393 = vmatprep.subr.bf16.mxu0 0
    %394 = vmatpush1.bf16.msra.mxu0 0
    %395 = vmatprep.subr.bf16.mxu0 0
    %396 = vmatpush1.bf16.msra.mxu0 0
    %397 = vmatprep.subr.bf16.mxu0 0
    %398 = vmatpush1.bf16.msra.mxu0 0
    %399 = vmatprep.subr.bf16.mxu0 0
    %400 = vmatpush1.bf16.msra.mxu0 0
    %401 = vmatprep.subr.bf16.mxu0 0
    %402 = vmatpush1.bf16.msra.mxu0 0
    %403 = vmatprep.subr.bf16.mxu0 0
    %404 = vmatpush1.bf16.msra.mxu0 0
    %405 = vmatprep.subr.bf16.mxu0 0
    %406 = vmatpush1.bf16.msra.mxu0 0
    %407 = vmatprep.subr.bf16.mxu0 0
    %408 = vmatpush1.bf16.msra.mxu0 0
    %409 = vmatprep.subr.bf16.mxu0 0
    %410 = vmatpush1.bf16.msra.mxu0 0
    %411 = vmatprep.subr.bf16.mxu0 0
    %412 = vmatpush1.bf16.msra.mxu0 0
    %413 = vmatprep.subr.bf16.mxu0 0
    %414 = vmatpush1.bf16.msra.mxu0 0
    %415 = vmatprep.mubr.bf16.mxu0 0
    %416 = vmatmul.mubr.bf16.gmra.mrb[0].mxu0 %v334
    %v417 = vpop.f32.mrb[0].mxu0
    %v418 = vadd.f32 %v330, %v417
    %v419 = vpop.f32.mrb[0].mxu0
    %v420 = vpop.f32.mrb[0].mxu0
    %v421 = vpop.f32.mrb[0].mxu0
    %422 = vdwg.mxu0
    %v423 = vsel %vm282, %v374, 0.0
    %424 = vadd.xlane.f32.xlu0 %v423
    %v425 = vpop.xlane.xlu0 %424
    %v426 = vadd.f32 %v425, 0.0
    %v427 = vsel %vm282, %v418, 0.0
    %428 = vadd.xlane.f32.xlu0 %v427
    %v429 = vpop.xlane.xlu0 %428
    %v430 = vadd.f32 %v426, %v429
    %v431 = vmul.f32 %v374, %v374
    %v432 = vsel %vm282, %v431, 0.0
    %433 = vadd.xlane.f32.xlu0 %v432
    %v434 = vpop.xlane.xlu0 %433
    %v435 = vadd.f32 %v434, 0.0
    %v436 = vmul.f32 %v418, %v418
    %v437 = vsel %vm282, %v436, 0.0
    %438 = vadd.xlane.f32.xlu0 %v437
    %v439 = vpop.xlane.xlu0 %438
    %v440 = vadd.f32 %v435, %v439
    %v441 = vmul.f32 %v430, 0.01923077
    %v442 = vmul.f32 %v440, 0.01923077
    %v443 = vmul.f32 %v441, %v441
    %v444 = vsub.f32 %v442, %v443
    %v445 = vadd.f32 %v444, 1e-05
    %v446 = vrsqrt.pop %v445
    %v447 = vmul.f32 %v166, %v446
    %v448 = vmul.f32 %v441, %v447
    %v449 = vsub.f32 %v167, %v448
    %451 = vset.pattern.permute.xlu0 0
    %452 = vperm.xlu0 %451, %v447
    %v453 = vpop.permute.xlu0 %452
    %v455 = vmul.f32 %v374, %v453
    %457 = vset.pattern.permute.xlu0 0
    %458 = vperm.xlu0 %457, %v449
    %v459 = vpop.permute.xlu0 %458
    %v461 = vadd.f32 %v455, %v459
    %v462 = vadd.f32 %v461, %v170
    %v463 = vmax.f32 %v462, 0.0
    %v464 = vmul.f32 %v418, %v453
    %v465 = vadd.f32 %v464, %v459
    %v466 = vadd.f32 %v465, %v232
    %v467 = vmax.f32 %v466, 0.0
    %s468 = scalar_lea.vmem %s3, 4
    %v469 = vld [vmem:[%s468] sm:$0xf]
    %s470 = scalar_lea.vmem %s7, 4
    %v471 = vld [vmem:[%s470] sm:$0xf]
    %s472 = scalar_lea.vmem %s4, 8
    %v473 = vld [vmem:[%s472] sm:$0xff]
    %s474 = scalar_lea.vmem %s5, 8
    %v475 = vld [vmem:[%s474] sm:$0xff]
    %s476 = scalar_lea.vmem %s6, 8
    %v477 = vld [vmem:[%s476] sm:$0xff]
    %s478 = scalar_lea.vmem %s8, 8
    %v479 = vld [vmem:[%s478] sm:$0xff]
    %s480 = scalar_lea.vmem %s9, 8
    %v481 = vld [vmem:[%s480] sm:$0xff]
    %s482 = scalar_lea.vmem %s10, 8
    %v483 = vld [vmem:[%s482] sm:$0xff]
    %485 = vrot.lane.b32.xlu0 %v463, 126
    %v486 = vpop.permute.xlu0 %485
    %488 = vrot.lane.b32.xlu0 %v463, 124
    %v489 = vpop.permute.xlu0 %488
    %v491 = vpack.c.bf16 %v486, %v463
    %v492 = vpack.c.bf16 %v489, %v489
    %494 = vset.pattern.permute.xlu0 0
    %495 = vperm.xlu0 %494, %v473
    %v496 = vpop.permute.xlu0 %495
    %v499 = vsel %vm182, %v469, 0
    %v502 = vsel %vm186, %v492, 0
    %504 = vmatprep.subr.bf16.mxu0 0
    %505 = vmatpush1.bf16.msra.mxu0 %v491
    %506 = vmatprep.subr.bf16.mxu0 0
    %507 = vmatpush1.bf16.msra.mxu0 %v502
    %508 = vmatprep.subr.bf16.mxu0 0
    %509 = vmatpush1.bf16.msra.mxu0 0
    %510 = vmatprep.subr.bf16.mxu0 0
    %511 = vmatpush1.bf16.msra.mxu0 0
    %512 = vmatprep.subr.bf16.mxu0 0
    %513 = vmatpush1.bf16.msra.mxu0 0
    %514 = vmatprep.subr.bf16.mxu0 0
    %515 = vmatpush1.bf16.msra.mxu0 0
    %516 = vmatprep.subr.bf16.mxu0 0
    %517 = vmatpush1.bf16.msra.mxu0 0
    %518 = vmatprep.subr.bf16.mxu0 0
    %519 = vmatpush1.bf16.msra.mxu0 0
    %520 = vmatprep.subr.bf16.mxu0 0
    %521 = vmatpush1.bf16.msra.mxu0 0
    %522 = vmatprep.subr.bf16.mxu0 0
    %523 = vmatpush1.bf16.msra.mxu0 0
    %524 = vmatprep.subr.bf16.mxu0 0
    %525 = vmatpush1.bf16.msra.mxu0 0
    %526 = vmatprep.subr.bf16.mxu0 0
    %527 = vmatpush1.bf16.msra.mxu0 0
    %528 = vmatprep.subr.bf16.mxu0 0
    %529 = vmatpush1.bf16.msra.mxu0 0
    %530 = vmatprep.subr.bf16.mxu0 0
    %531 = vmatpush1.bf16.msra.mxu0 0
    %532 = vmatprep.subr.bf16.mxu0 0
    %533 = vmatpush1.bf16.msra.mxu0 0
    %534 = vmatprep.subr.bf16.mxu0 0
    %535 = vmatpush1.bf16.msra.mxu0 0
    %536 = vmatprep.mubr.bf16.mxu0 0
    %537 = vmatmul.mubr.bf16.gmra.mrb[0].mxu0 %v499
    %v538 = vpop.f32.mrb[0].mxu0
    %v539 = vadd.f32 %v496, %v538
    %v540 = vpop.f32.mrb[0].mxu0
    %v541 = vpop.f32.mrb[0].mxu0
    %v542 = vpop.f32.mrb[0].mxu0
    %543 = vdwg.mxu0
    %545 = vrot.lane.b32.xlu0 %v467, 126
    %v546 = vpop.permute.xlu0 %545
    %548 = vrot.lane.b32.xlu0 %v467, 124
    %v549 = vpop.permute.xlu0 %548
    %v551 = vpack.c.bf16 %v546, %v467
    %v552 = vpack.c.bf16 %v549, %v549
    %v554 = vsel %vm186, %v552, 0
    %556 = vmatprep.subr.bf16.mxu0 0
    %557 = vmatpush1.bf16.msra.mxu0 %v551
    %558 = vmatprep.subr.bf16.mxu0 0
    %559 = vmatpush1.bf16.msra.mxu0 %v554
    %560 = vmatprep.subr.bf16.mxu0 0
    %561 = vmatpush1.bf16.msra.mxu0 0
    %562 = vmatprep.subr.bf16.mxu0 0
    %563 = vmatpush1.bf16.msra.mxu0 0
    %564 = vmatprep.subr.bf16.mxu0 0
    %565 = vmatpush1.bf16.msra.mxu0 0
    %566 = vmatprep.subr.bf16.mxu0 0
    %567 = vmatpush1.bf16.msra.mxu0 0
    %568 = vmatprep.subr.bf16.mxu0 0
    %569 = vmatpush1.bf16.msra.mxu0 0
    %570 = vmatprep.subr.bf16.mxu0 0
    %571 = vmatpush1.bf16.msra.mxu0 0
    %572 = vmatprep.subr.bf16.mxu0 0
    %573 = vmatpush1.bf16.msra.mxu0 0
    %574 = vmatprep.subr.bf16.mxu0 0
    %575 = vmatpush1.bf16.msra.mxu0 0
    %576 = vmatprep.subr.bf16.mxu0 0
    %577 = vmatpush1.bf16.msra.mxu0 0
    %578 = vmatprep.subr.bf16.mxu0 0
    %579 = vmatpush1.bf16.msra.mxu0 0
    %580 = vmatprep.subr.bf16.mxu0 0
    %581 = vmatpush1.bf16.msra.mxu0 0
    %582 = vmatprep.subr.bf16.mxu0 0
    %583 = vmatpush1.bf16.msra.mxu0 0
    %584 = vmatprep.subr.bf16.mxu0 0
    %585 = vmatpush1.bf16.msra.mxu0 0
    %586 = vmatprep.subr.bf16.mxu0 0
    %587 = vmatpush1.bf16.msra.mxu0 0
    %588 = vmatprep.mubr.bf16.mxu0 0
    %589 = vmatmul.mubr.bf16.gmra.mrb[0].mxu0 %v499
    %v590 = vpop.f32.mrb[0].mxu0
    %v591 = vadd.f32 %v496, %v590
    %v592 = vpop.f32.mrb[0].mxu0
    %v593 = vpop.f32.mrb[0].mxu0
    %v594 = vpop.f32.mrb[0].mxu0
    %595 = vdwg.mxu0
    %vm596 = vcmask 179200
    %v597 = vsel %vm596, %v539, 0.0
    %598 = vadd.xlane.f32.xlu0 %v597
    %v599 = vpop.xlane.xlu0 %598
    %v600 = vadd.f32 %v599, 0.0
    %v601 = vsel %vm596, %v591, 0.0
    %602 = vadd.xlane.f32.xlu0 %v601
    %v603 = vpop.xlane.xlu0 %602
    %v604 = vadd.f32 %v600, %v603
    %v605 = vmul.f32 %v539, %v539
    %v606 = vsel %vm596, %v605, 0.0
    %607 = vadd.xlane.f32.xlu0 %v606
    %v608 = vpop.xlane.xlu0 %607
    %v609 = vadd.f32 %v608, 0.0
    %v610 = vmul.f32 %v591, %v591
    %v611 = vsel %vm596, %v610, 0.0
    %612 = vadd.xlane.f32.xlu0 %v611
    %v613 = vpop.xlane.xlu0 %612
    %v614 = vadd.f32 %v609, %v613
    %v615 = vmul.f32 %v604, 0.022727273
    %v616 = vmul.f32 %v614, 0.022727273
    %v617 = vmul.f32 %v615, %v615
    %v618 = vsub.f32 %v616, %v617
    %v619 = vadd.f32 %v618, 1e-05
    %v620 = vrsqrt.pop %v619
    %v621 = vmul.f32 %v475, %v620
    %v622 = vmul.f32 %v615, %v621
    %v623 = vsub.f32 %v477, %v622
    %625 = vset.pattern.permute.xlu0 0
    %626 = vperm.xlu0 %625, %v621
    %v627 = vpop.permute.xlu0 %626
    %v629 = vmul.f32 %v539, %v627
    %631 = vset.pattern.permute.xlu0 0
    %632 = vperm.xlu0 %631, %v623
    %v633 = vpop.permute.xlu0 %632
    %v635 = vadd.f32 %v629, %v633
    %v636 = vmax.f32 %v635, 0.0
    %v637 = vmul.f32 %v591, %v627
    %v638 = vadd.f32 %v637, %v633
    %v639 = vmax.f32 %v638, 0.0
    %v640 = vpack.c.bf16 %v636, %v636
    %642 = vset.pattern.permute.xlu0 0
    %643 = vperm.xlu0 %642, %v479
    %v644 = vpop.permute.xlu0 %643
    %v647 = vsel %vm332, %v471, 0
    %v650 = vsel %vm186, %v640, 0
    %652 = vmatprep.subr.bf16.mxu0 0
    %653 = vmatpush1.bf16.msra.mxu0 %v650
    %654 = vmatprep.subr.bf16.mxu0 0
    %655 = vmatpush1.bf16.msra.mxu0 0
    %656 = vmatprep.subr.bf16.mxu0 0
    %657 = vmatpush1.bf16.msra.mxu0 0
    %658 = vmatprep.subr.bf16.mxu0 0
    %659 = vmatpush1.bf16.msra.mxu0 0
    %660 = vmatprep.subr.bf16.mxu0 0
    %661 = vmatpush1.bf16.msra.mxu0 0
    %662 = vmatprep.subr.bf16.mxu0 0
    %663 = vmatpush1.bf16.msra.mxu0 0
    %664 = vmatprep.subr.bf16.mxu0 0
    %665 = vmatpush1.bf16.msra.mxu0 0
    %666 = vmatprep.subr.bf16.mxu0 0
    %667 = vmatpush1.bf16.msra.mxu0 0
    %668 = vmatprep.subr.bf16.mxu0 0
    %669 = vmatpush1.bf16.msra.mxu0 0
    %670 = vmatprep.subr.bf16.mxu0 0
    %671 = vmatpush1.bf16.msra.mxu0 0
    %672 = vmatprep.subr.bf16.mxu0 0
    %673 = vmatpush1.bf16.msra.mxu0 0
    %674 = vmatprep.subr.bf16.mxu0 0
    %675 = vmatpush1.bf16.msra.mxu0 0
    %676 = vmatprep.subr.bf16.mxu0 0
    %677 = vmatpush1.bf16.msra.mxu0 0
    %678 = vmatprep.subr.bf16.mxu0 0
    %679 = vmatpush1.bf16.msra.mxu0 0
    %680 = vmatprep.subr.bf16.mxu0 0
    %681 = vmatpush1.bf16.msra.mxu0 0
    %682 = vmatprep.subr.bf16.mxu0 0
    %683 = vmatpush1.bf16.msra.mxu0 0
    %684 = vmatprep.mubr.bf16.mxu0 0
    %685 = vmatmul.mubr.bf16.gmra.mrb[0].mxu0 %v647
    %v686 = vpop.f32.mrb[0].mxu0
    %v687 = vadd.f32 %v644, %v686
    %v688 = vpop.f32.mrb[0].mxu0
    %v689 = vpop.f32.mrb[0].mxu0
    %v690 = vpop.f32.mrb[0].mxu0
    %691 = vdwg.mxu0
    %v692 = vpack.c.bf16 %v639, %v639
    %v694 = vsel %vm186, %v692, 0
    %696 = vmatprep.subr.bf16.mxu0 0
    %697 = vmatpush1.bf16.msra.mxu0 %v694
    %698 = vmatprep.subr.bf16.mxu0 0
    %699 = vmatpush1.bf16.msra.mxu0 0
    %700 = vmatprep.subr.bf16.mxu0 0
    %701 = vmatpush1.bf16.msra.mxu0 0
    %702 = vmatprep.subr.bf16.mxu0 0
    %703 = vmatpush1.bf16.msra.mxu0 0
    %704 = vmatprep.subr.bf16.mxu0 0
    %705 = vmatpush1.bf16.msra.mxu0 0
    %706 = vmatprep.subr.bf16.mxu0 0
    %707 = vmatpush1.bf16.msra.mxu0 0
    %708 = vmatprep.subr.bf16.mxu0 0
    %709 = vmatpush1.bf16.msra.mxu0 0
    %710 = vmatprep.subr.bf16.mxu0 0
    %711 = vmatpush1.bf16.msra.mxu0 0
    %712 = vmatprep.subr.bf16.mxu0 0
    %713 = vmatpush1.bf16.msra.mxu0 0
    %714 = vmatprep.subr.bf16.mxu0 0
    %715 = vmatpush1.bf16.msra.mxu0 0
    %716 = vmatprep.subr.bf16.mxu0 0
    %717 = vmatpush1.bf16.msra.mxu0 0
    %718 = vmatprep.subr.bf16.mxu0 0
    %719 = vmatpush1.bf16.msra.mxu0 0
    %720 = vmatprep.subr.bf16.mxu0 0
    %721 = vmatpush1.bf16.msra.mxu0 0
    %722 = vmatprep.subr.bf16.mxu0 0
    %723 = vmatpush1.bf16.msra.mxu0 0
    %724 = vmatprep.subr.bf16.mxu0 0
    %725 = vmatpush1.bf16.msra.mxu0 0
    %726 = vmatprep.subr.bf16.mxu0 0
    %727 = vmatpush1.bf16.msra.mxu0 0
    %728 = vmatprep.mubr.bf16.mxu0 0
    %729 = vmatmul.mubr.bf16.gmra.mrb[0].mxu0 %v647
    %v730 = vpop.f32.mrb[0].mxu0
    %v731 = vadd.f32 %v644, %v730
    %v732 = vpop.f32.mrb[0].mxu0
    %v733 = vpop.f32.mrb[0].mxu0
    %v734 = vpop.f32.mrb[0].mxu0
    %735 = vdwg.mxu0
    %v736 = vsel %vm596, %v687, 0.0
    %737 = vadd.xlane.f32.xlu0 %v736
    %v738 = vpop.xlane.xlu0 %737
    %v739 = vadd.f32 %v738, 0.0
    %v740 = vsel %vm596, %v731, 0.0
    %741 = vadd.xlane.f32.xlu0 %v740
    %v742 = vpop.xlane.xlu0 %741
    %v743 = vadd.f32 %v739, %v742
    %v744 = vmul.f32 %v687, %v687
    %v745 = vsel %vm596, %v744, 0.0
    %746 = vadd.xlane.f32.xlu0 %v745
    %v747 = vpop.xlane.xlu0 %746
    %v748 = vadd.f32 %v747, 0.0
    %v749 = vmul.f32 %v731, %v731
    %v750 = vsel %vm596, %v749, 0.0
    %751 = vadd.xlane.f32.xlu0 %v750
    %v752 = vpop.xlane.xlu0 %751
    %v753 = vadd.f32 %v748, %v752
    %v754 = vmul.f32 %v743, 0.022727273
    %v755 = vmul.f32 %v753, 0.022727273
    %v756 = vmul.f32 %v754, %v754
    %v757 = vsub.f32 %v755, %v756
    %v758 = vadd.f32 %v757, 1e-05
    %v759 = vrsqrt.pop %v758
    %v760 = vmul.f32 %v481, %v759
    %v761 = vmul.f32 %v754, %v760
    %v762 = vsub.f32 %v483, %v761
    %764 = vset.pattern.permute.xlu0 0
    %765 = vperm.xlu0 %764, %v760
    %v766 = vpop.permute.xlu0 %765
    %v768 = vmul.f32 %v687, %v766
    %770 = vset.pattern.permute.xlu0 0
    %771 = vperm.xlu0 %770, %v762
    %v772 = vpop.permute.xlu0 %771
    %v774 = vadd.f32 %v768, %v772
    %v775 = vadd.f32 %v774, %v486
    %v776 = vmax.f32 %v775, 0.0
    %v777 = vmul.f32 %v731, %v766
    %v778 = vadd.f32 %v777, %v772
    %v779 = vadd.f32 %v778, %v546
    %v780 = vmax.f32 %v779, 0.0
    %s781 = scalar_lea.vmem %s3, 8
    %v782 = vld [vmem:[%s781] sm:$0xf]
    %s783 = scalar_lea.vmem %s7, 8
    %v784 = vld [vmem:[%s783] sm:$0xf]
    %s785 = scalar_lea.vmem %s4, 16
    %v786 = vld [vmem:[%s785] sm:$0xff]
    %s787 = scalar_lea.vmem %s5, 16
    %v788 = vld [vmem:[%s787] sm:$0xff]
    %s789 = scalar_lea.vmem %s6, 16
    %v790 = vld [vmem:[%s789] sm:$0xff]
    %s791 = scalar_lea.vmem %s8, 16
    %v792 = vld [vmem:[%s791] sm:$0xff]
    %s793 = scalar_lea.vmem %s9, 16
    %v794 = vld [vmem:[%s793] sm:$0xff]
    %s795 = scalar_lea.vmem %s10, 16
    %v796 = vld [vmem:[%s795] sm:$0xff]
    %798 = vrot.lane.b32.xlu0 %v776, 127
    %v799 = vpop.permute.xlu0 %798
    %801 = vrot.lane.b32.xlu0 %v776, 126
    %v802 = vpop.permute.xlu0 %801
    %v804 = vpack.c.bf16 %v799, %v776
    %v805 = vpack.c.bf16 %v802, %v802
    %807 = vset.pattern.permute.xlu0 0
    %808 = vperm.xlu0 %807, %v786
    %v809 = vpop.permute.xlu0 %808
    %v812 = vsel %vm182, %v782, 0
    %v815 = vsel %vm186, %v805, 0
    %817 = vmatprep.subr.bf16.mxu0 0
    %818 = vmatpush1.bf16.msra.mxu0 %v804
    %819 = vmatprep.subr.bf16.mxu0 0
    %820 = vmatpush1.bf16.msra.mxu0 %v815
    %821 = vmatprep.subr.bf16.mxu0 0
    %822 = vmatpush1.bf16.msra.mxu0 0
    %823 = vmatprep.subr.bf16.mxu0 0
    %824 = vmatpush1.bf16.msra.mxu0 0
    %825 = vmatprep.subr.bf16.mxu0 0
    %826 = vmatpush1.bf16.msra.mxu0 0
    %827 = vmatprep.subr.bf16.mxu0 0
    %828 = vmatpush1.bf16.msra.mxu0 0
    %829 = vmatprep.subr.bf16.mxu0 0
    %830 = vmatpush1.bf16.msra.mxu0 0
    %831 = vmatprep.subr.bf16.mxu0 0
    %832 = vmatpush1.bf16.msra.mxu0 0
    %833 = vmatprep.subr.bf16.mxu0 0
    %834 = vmatpush1.bf16.msra.mxu0 0
    %835 = vmatprep.subr.bf16.mxu0 0
    %836 = vmatpush1.bf16.msra.mxu0 0
    %837 = vmatprep.subr.bf16.mxu0 0
    %838 = vmatpush1.bf16.msra.mxu0 0
    %839 = vmatprep.subr.bf16.mxu0 0
    %840 = vmatpush1.bf16.msra.mxu0 0
    %841 = vmatprep.subr.bf16.mxu0 0
    %842 = vmatpush1.bf16.msra.mxu0 0
    %843 = vmatprep.subr.bf16.mxu0 0
    %844 = vmatpush1.bf16.msra.mxu0 0
    %845 = vmatprep.subr.bf16.mxu0 0
    %846 = vmatpush1.bf16.msra.mxu0 0
    %847 = vmatprep.subr.bf16.mxu0 0
    %848 = vmatpush1.bf16.msra.mxu0 0
    %849 = vmatprep.mubr.bf16.mxu0 0
    %850 = vmatmul.mubr.bf16.gmra.mrb[0].mxu0 %v812
    %v851 = vpop.f32.mrb[0].mxu0
    %v852 = vadd.f32 %v809, %v851
    %v853 = vpop.f32.mrb[0].mxu0
    %v854 = vpop.f32.mrb[0].mxu0
    %v855 = vpop.f32.mrb[0].mxu0
    %856 = vdwg.mxu0
    %858 = vrot.lane.b32.xlu0 %v780, 127
    %v859 = vpop.permute.xlu0 %858
    %861 = vrot.lane.b32.xlu0 %v780, 126
    %v862 = vpop.permute.xlu0 %861
    %v864 = vpack.c.bf16 %v859, %v780
    %v865 = vpack.c.bf16 %v862, %v862
    %v867 = vsel %vm186, %v865, 0
    %869 = vmatprep.subr.bf16.mxu0 0
    %870 = vmatpush1.bf16.msra.mxu0 %v864
    %871 = vmatprep.subr.bf16.mxu0 0
    %872 = vmatpush1.bf16.msra.mxu0 %v867
    %873 = vmatprep.subr.bf16.mxu0 0
    %874 = vmatpush1.bf16.msra.mxu0 0
    %875 = vmatprep.subr.bf16.mxu0 0
    %876 = vmatpush1.bf16.msra.mxu0 0
    %877 = vmatprep.subr.bf16.mxu0 0
    %878 = vmatpush1.bf16.msra.mxu0 0
    %879 = vmatprep.subr.bf16.mxu0 0
    %880 = vmatpush1.bf16.msra.mxu0 0
    %881 = vmatprep.subr.bf16.mxu0 0
    %882 = vmatpush1.bf16.msra.mxu0 0
    %883 = vmatprep.subr.bf16.mxu0 0
    %884 = vmatpush1.bf16.msra.mxu0 0
    %885 = vmatprep.subr.bf16.mxu0 0
    %886 = vmatpush1.bf16.msra.mxu0 0
    %887 = vmatprep.subr.bf16.mxu0 0
    %888 = vmatpush1.bf16.msra.mxu0 0
    %889 = vmatprep.subr.bf16.mxu0 0
    %890 = vmatpush1.bf16.msra.mxu0 0
    %891 = vmatprep.subr.bf16.mxu0 0
    %892 = vmatpush1.bf16.msra.mxu0 0
    %893 = vmatprep.subr.bf16.mxu0 0
    %894 = vmatpush1.bf16.msra.mxu0 0
    %895 = vmatprep.subr.bf16.mxu0 0
    %896 = vmatpush1.bf16.msra.mxu0 0
    %897 = vmatprep.subr.bf16.mxu0 0
    %898 = vmatpush1.bf16.msra.mxu0 0
    %899 = vmatprep.subr.bf16.mxu0 0
    %900 = vmatpush1.bf16.msra.mxu0 0
    %901 = vmatprep.mubr.bf16.mxu0 0
    %902 = vmatmul.mubr.bf16.gmra.mrb[0].mxu0 %v812
    %v903 = vpop.f32.mrb[0].mxu0
    %v904 = vadd.f32 %v809, %v903
    %v905 = vpop.f32.mrb[0].mxu0
    %v906 = vpop.f32.mrb[0].mxu0
    %v907 = vpop.f32.mrb[0].mxu0
    %908 = vdwg.mxu0
    %vm909 = vcmask 162816
    %v910 = vsel %vm909, %v852, 0.0
    %911 = vadd.xlane.f32.xlu0 %v910
    %v912 = vpop.xlane.xlu0 %911
    %v913 = vadd.f32 %v912, 0.0
    %v914 = vsel %vm909, %v904, 0.0
    %915 = vadd.xlane.f32.xlu0 %v914
    %v916 = vpop.xlane.xlu0 %915
    %v917 = vadd.f32 %v913, %v916
    %v918 = vmul.f32 %v852, %v852
    %v919 = vsel %vm909, %v918, 0.0
    %920 = vadd.xlane.f32.xlu0 %v919
    %v921 = vpop.xlane.xlu0 %920
    %v922 = vadd.f32 %v921, 0.0
    %v923 = vmul.f32 %v904, %v904
    %v924 = vsel %vm909, %v923, 0.0
    %925 = vadd.xlane.f32.xlu0 %v924
    %v926 = vpop.xlane.xlu0 %925
    %v927 = vadd.f32 %v922, %v926
    %v928 = vmul.f32 %v917, 0.025
    %v929 = vmul.f32 %v927, 0.025
    %v930 = vmul.f32 %v928, %v928
    %v931 = vsub.f32 %v929, %v930
    %v932 = vadd.f32 %v931, 1e-05
    %v933 = vrsqrt.pop %v932
    %v934 = vmul.f32 %v788, %v933
    %v935 = vmul.f32 %v928, %v934
    %v936 = vsub.f32 %v790, %v935
    %938 = vset.pattern.permute.xlu0 0
    %939 = vperm.xlu0 %938, %v934
    %v940 = vpop.permute.xlu0 %939
    %v942 = vmul.f32 %v852, %v940
    %944 = vset.pattern.permute.xlu0 0
    %945 = vperm.xlu0 %944, %v936
    %v946 = vpop.permute.xlu0 %945
    %v948 = vadd.f32 %v942, %v946
    %v949 = vmax.f32 %v948, 0.0
    %v950 = vmul.f32 %v904, %v940
    %v951 = vadd.f32 %v950, %v946
    %v952 = vmax.f32 %v951, 0.0
    %v953 = vpack.c.bf16 %v949, %v949
    %955 = vset.pattern.permute.xlu0 0
    %956 = vperm.xlu0 %955, %v792
    %v957 = vpop.permute.xlu0 %956
    %v960 = vsel %vm332, %v784, 0
    %v963 = vsel %vm186, %v953, 0
    %965 = vmatprep.subr.bf16.mxu0 0
    %966 = vmatpush1.bf16.msra.mxu0 %v963
    %967 = vmatprep.subr.bf16.mxu0 0
    %968 = vmatpush1.bf16.msra.mxu0 0
    %969 = vmatprep.subr.bf16.mxu0 0
    %970 = vmatpush1.bf16.msra.mxu0 0
    %971 = vmatprep.subr.bf16.mxu0 0
    %972 = vmatpush1.bf16.msra.mxu0 0
    %973 = vmatprep.subr.bf16.mxu0 0
    %974 = vmatpush1.bf16.msra.mxu0 0
    %975 = vmatprep.subr.bf16.mxu0 0
    %976 = vmatpush1.bf16.msra.mxu0 0
    %977 = vmatprep.subr.bf16.mxu0 0
    %978 = vmatpush1.bf16.msra.mxu0 0
    %979 = vmatprep.subr.bf16.mxu0 0
    %980 = vmatpush1.bf16.msra.mxu0 0
    %981 = vmatprep.subr.bf16.mxu0 0
    %982 = vmatpush1.bf16.msra.mxu0 0
    %983 = vmatprep.subr.bf16.mxu0 0
    %984 = vmatpush1.bf16.msra.mxu0 0
    %985 = vmatprep.subr.bf16.mxu0 0
    %986 = vmatpush1.bf16.msra.mxu0 0
    %987 = vmatprep.subr.bf16.mxu0 0
    %988 = vmatpush1.bf16.msra.mxu0 0
    %989 = vmatprep.subr.bf16.mxu0 0
    %990 = vmatpush1.bf16.msra.mxu0 0
    %991 = vmatprep.subr.bf16.mxu0 0
    %992 = vmatpush1.bf16.msra.mxu0 0
    %993 = vmatprep.subr.bf16.mxu0 0
    %994 = vmatpush1.bf16.msra.mxu0 0
    %995 = vmatprep.subr.bf16.mxu0 0
    %996 = vmatpush1.bf16.msra.mxu0 0
    %997 = vmatprep.mubr.bf16.mxu0 0
    %998 = vmatmul.mubr.bf16.gmra.mrb[0].mxu0 %v960
    %v999 = vpop.f32.mrb[0].mxu0
    %v1000 = vadd.f32 %v957, %v999
    %v1001 = vpop.f32.mrb[0].mxu0
    %v1002 = vpop.f32.mrb[0].mxu0
    %v1003 = vpop.f32.mrb[0].mxu0
    %1004 = vdwg.mxu0
    %v1005 = vpack.c.bf16 %v952, %v952
    %v1007 = vsel %vm186, %v1005, 0
    %1009 = vmatprep.subr.bf16.mxu0 0
    %1010 = vmatpush1.bf16.msra.mxu0 %v1007
    %1011 = vmatprep.subr.bf16.mxu0 0
    %1012 = vmatpush1.bf16.msra.mxu0 0
    %1013 = vmatprep.subr.bf16.mxu0 0
    %1014 = vmatpush1.bf16.msra.mxu0 0
    %1015 = vmatprep.subr.bf16.mxu0 0
    %1016 = vmatpush1.bf16.msra.mxu0 0
    %1017 = vmatprep.subr.bf16.mxu0 0
    %1018 = vmatpush1.bf16.msra.mxu0 0
    %1019 = vmatprep.subr.bf16.mxu0 0
    %1020 = vmatpush1.bf16.msra.mxu0 0
    %1021 = vmatprep.subr.bf16.mxu0 0
    %1022 = vmatpush1.bf16.msra.mxu0 0
    %1023 = vmatprep.subr.bf16.mxu0 0
    %1024 = vmatpush1.bf16.msra.mxu0 0
    %1025 = vmatprep.subr.bf16.mxu0 0
    %1026 = vmatpush1.bf16.msra.mxu0 0
    %1027 = vmatprep.subr.bf16.mxu0 0
    %1028 = vmatpush1.bf16.msra.mxu0 0
    %1029 = vmatprep.subr.bf16.mxu0 0
    %1030 = vmatpush1.bf16.msra.mxu0 0
    %1031 = vmatprep.subr.bf16.mxu0 0
    %1032 = vmatpush1.bf16.msra.mxu0 0
    %1033 = vmatprep.subr.bf16.mxu0 0
    %1034 = vmatpush1.bf16.msra.mxu0 0
    %1035 = vmatprep.subr.bf16.mxu0 0
    %1036 = vmatpush1.bf16.msra.mxu0 0
    %1037 = vmatprep.subr.bf16.mxu0 0
    %1038 = vmatpush1.bf16.msra.mxu0 0
    %1039 = vmatprep.subr.bf16.mxu0 0
    %1040 = vmatpush1.bf16.msra.mxu0 0
    %1041 = vmatprep.mubr.bf16.mxu0 0
    %1042 = vmatmul.mubr.bf16.gmra.mrb[0].mxu0 %v960
    %v1043 = vpop.f32.mrb[0].mxu0
    %v1044 = vadd.f32 %v957, %v1043
    %v1045 = vpop.f32.mrb[0].mxu0
    %v1046 = vpop.f32.mrb[0].mxu0
    %v1047 = vpop.f32.mrb[0].mxu0
    %1048 = vdwg.mxu0
    %v1049 = vsel %vm909, %v1000, 0.0
    %1050 = vadd.xlane.f32.xlu0 %v1049
    %v1051 = vpop.xlane.xlu0 %1050
    %v1052 = vadd.f32 %v1051, 0.0
    %v1053 = vsel %vm909, %v1044, 0.0
    %1054 = vadd.xlane.f32.xlu0 %v1053
    %v1055 = vpop.xlane.xlu0 %1054
    %v1056 = vadd.f32 %v1052, %v1055
    %v1057 = vmul.f32 %v1000, %v1000
    %v1058 = vsel %vm909, %v1057, 0.0
    %1059 = vadd.xlane.f32.xlu0 %v1058
    %v1060 = vpop.xlane.xlu0 %1059
    %v1061 = vadd.f32 %v1060, 0.0
    %v1062 = vmul.f32 %v1044, %v1044
    %v1063 = vsel %vm909, %v1062, 0.0
    %1064 = vadd.xlane.f32.xlu0 %v1063
    %v1065 = vpop.xlane.xlu0 %1064
    %v1066 = vadd.f32 %v1061, %v1065
    %v1067 = vmul.f32 %v1056, 0.025
    %v1068 = vmul.f32 %v1066, 0.025
    %v1069 = vmul.f32 %v1067, %v1067
    %v1070 = vsub.f32 %v1068, %v1069
    %v1071 = vadd.f32 %v1070, 1e-05
    %v1072 = vrsqrt.pop %v1071
    %v1073 = vmul.f32 %v794, %v1072
    %v1074 = vmul.f32 %v1067, %v1073
    %v1075 = vsub.f32 %v796, %v1074
    %1077 = vset.pattern.permute.xlu0 0
    %1078 = vperm.xlu0 %1077, %v1073
    %v1079 = vpop.permute.xlu0 %1078
    %v1081 = vmul.f32 %v1000, %v1079
    %1083 = vset.pattern.permute.xlu0 0
    %1084 = vperm.xlu0 %1083, %v1075
    %v1085 = vpop.permute.xlu0 %1084
    %v1087 = vadd.f32 %v1081, %v1085
    %v1088 = vadd.f32 %v1087, %v799
    %v1089 = vmax.f32 %v1088, 0.0
    %v1090 = vmul.f32 %v1044, %v1079
    %v1091 = vadd.f32 %v1090, %v1085
    %v1092 = vadd.f32 %v1091, %v859
    %v1093 = vmax.f32 %v1092, 0.0
    %s1094 = scalar_lea.vmem %s3, 12
    %v1095 = vld [vmem:[%s1094] sm:$0xf]
    %s1096 = scalar_lea.vmem %s7, 12
    %v1097 = vld [vmem:[%s1096] sm:$0xf]
    %s1098 = scalar_lea.vmem %s4, 24
    %v1099 = vld [vmem:[%s1098] sm:$0xff]
    %s1100 = scalar_lea.vmem %s5, 24
    %v1101 = vld [vmem:[%s1100] sm:$0xff]
    %s1102 = scalar_lea.vmem %s6, 24
    %v1103 = vld [vmem:[%s1102] sm:$0xff]
    %s1104 = scalar_lea.vmem %s8, 24
    %v1105 = vld [vmem:[%s1104] sm:$0xff]
    %s1106 = scalar_lea.vmem %s9, 24
    %v1107 = vld [vmem:[%s1106] sm:$0xff]
    %s1108 = scalar_lea.vmem %s10, 24
    %v1109 = vld [vmem:[%s1108] sm:$0xff]
    %1111 = vrot.lane.b32.xlu0 %v1089, 126
    %v1112 = vpop.permute.xlu0 %1111
    %1114 = vrot.lane.b32.xlu0 %v1089, 124
    %v1115 = vpop.permute.xlu0 %1114
    %v1117 = vpack.c.bf16 %v1112, %v1089
    %v1118 = vpack.c.bf16 %v1115, %v1115
    %1120 = vset.pattern.permute.xlu0 0
    %1121 = vperm.xlu0 %1120, %v1099
    %v1122 = vpop.permute.xlu0 %1121
    %v1125 = vsel %vm182, %v1095, 0
    %v1128 = vsel %vm186, %v1118, 0
    %1130 = vmatprep.subr.bf16.mxu0 0
    %1131 = vmatpush1.bf16.msra.mxu0 %v1117
    %1132 = vmatprep.subr.bf16.mxu0 0
    %1133 = vmatpush1.bf16.msra.mxu0 %v1128
    %1134 = vmatprep.subr.bf16.mxu0 0
    %1135 = vmatpush1.bf16.msra.mxu0 0
    %1136 = vmatprep.subr.bf16.mxu0 0
    %1137 = vmatpush1.bf16.msra.mxu0 0
    %1138 = vmatprep.subr.bf16.mxu0 0
    %1139 = vmatpush1.bf16.msra.mxu0 0
    %1140 = vmatprep.subr.bf16.mxu0 0
    %1141 = vmatpush1.bf16.msra.mxu0 0
    %1142 = vmatprep.subr.bf16.mxu0 0
    %1143 = vmatpush1.bf16.msra.mxu0 0
    %1144 = vmatprep.subr.bf16.mxu0 0
    %1145 = vmatpush1.bf16.msra.mxu0 0
    %1146 = vmatprep.subr.bf16.mxu0 0
    %1147 = vmatpush1.bf16.msra.mxu0 0
    %1148 = vmatprep.subr.bf16.mxu0 0
    %1149 = vmatpush1.bf16.msra.mxu0 0
    %1150 = vmatprep.subr.bf16.mxu0 0
    %1151 = vmatpush1.bf16.msra.mxu0 0
    %1152 = vmatprep.subr.bf16.mxu0 0
    %1153 = vmatpush1.bf16.msra.mxu0 0
    %1154 = vmatprep.subr.bf16.mxu0 0
    %1155 = vmatpush1.bf16.msra.mxu0 0
    %1156 = vmatprep.subr.bf16.mxu0 0
    %1157 = vmatpush1.bf16.msra.mxu0 0
    %1158 = vmatprep.subr.bf16.mxu0 0
    %1159 = vmatpush1.bf16.msra.mxu0 0
    %1160 = vmatprep.subr.bf16.mxu0 0
    %1161 = vmatpush1.bf16.msra.mxu0 0
    %1162 = vmatprep.mubr.bf16.mxu0 0
    %1163 = vmatmul.mubr.bf16.gmra.mrb[0].mxu0 %v1125
    %v1164 = vpop.f32.mrb[0].mxu0
    %v1165 = vadd.f32 %v1122, %v1164
    %v1166 = vpop.f32.mrb[0].mxu0
    %v1167 = vpop.f32.mrb[0].mxu0
    %v1168 = vpop.f32.mrb[0].mxu0
    %1169 = vdwg.mxu0
    %1171 = vrot.lane.b32.xlu0 %v1093, 126
    %v1172 = vpop.permute.xlu0 %1171
    %1174 = vrot.lane.b32.xlu0 %v1093, 124
    %v1175 = vpop.permute.xlu0 %1174
    %v1177 = vpack.c.bf16 %v1172, %v1093
    %v1178 = vpack.c.bf16 %v1175, %v1175
    %v1180 = vsel %vm186, %v1178, 0
    %1182 = vmatprep.subr.bf16.mxu0 0
    %1183 = vmatpush1.bf16.msra.mxu0 %v1177
    %1184 = vmatprep.subr.bf16.mxu0 0
    %1185 = vmatpush1.bf16.msra.mxu0 %v1180
    %1186 = vmatprep.subr.bf16.mxu0 0
    %1187 = vmatpush1.bf16.msra.mxu0 0
    %1188 = vmatprep.subr.bf16.mxu0 0
    %1189 = vmatpush1.bf16.msra.mxu0 0
    %1190 = vmatprep.subr.bf16.mxu0 0
    %1191 = vmatpush1.bf16.msra.mxu0 0
    %1192 = vmatprep.subr.bf16.mxu0 0
    %1193 = vmatpush1.bf16.msra.mxu0 0
    %1194 = vmatprep.subr.bf16.mxu0 0
    %1195 = vmatpush1.bf16.msra.mxu0 0
    %1196 = vmatprep.subr.bf16.mxu0 0
    %1197 = vmatpush1.bf16.msra.mxu0 0
    %1198 = vmatprep.subr.bf16.mxu0 0
    %1199 = vmatpush1.bf16.msra.mxu0 0
    %1200 = vmatprep.subr.bf16.mxu0 0
    %1201 = vmatpush1.bf16.msra.mxu0 0
    %1202 = vmatprep.subr.bf16.mxu0 0
    %1203 = vmatpush1.bf16.msra.mxu0 0
    %1204 = vmatprep.subr.bf16.mxu0 0
    %1205 = vmatpush1.bf16.msra.mxu0 0
    %1206 = vmatprep.subr.bf16.mxu0 0
    %1207 = vmatpush1.bf16.msra.mxu0 0
    %1208 = vmatprep.subr.bf16.mxu0 0
    %1209 = vmatpush1.bf16.msra.mxu0 0
    %1210 = vmatprep.subr.bf16.mxu0 0
    %1211 = vmatpush1.bf16.msra.mxu0 0
    %1212 = vmatprep.subr.bf16.mxu0 0
    %1213 = vmatpush1.bf16.msra.mxu0 0
    %1214 = vmatprep.mubr.bf16.mxu0 0
    %1215 = vmatmul.mubr.bf16.gmra.mrb[0].mxu0 %v1125
    %v1216 = vpop.f32.mrb[0].mxu0
    %v1217 = vadd.f32 %v1122, %v1216
    %v1218 = vpop.f32.mrb[0].mxu0
    %v1219 = vpop.f32.mrb[0].mxu0
    %v1220 = vpop.f32.mrb[0].mxu0
    %1221 = vdwg.mxu0
    %vm1222 = vcmask 130048
    %v1223 = vsel %vm1222, %v1165, 0.0
    %1224 = vadd.xlane.f32.xlu0 %v1223
    %v1225 = vpop.xlane.xlu0 %1224
    %v1226 = vadd.f32 %v1225, 0.0
    %v1227 = vsel %vm1222, %v1217, 0.0
    %1228 = vadd.xlane.f32.xlu0 %v1227
    %v1229 = vpop.xlane.xlu0 %1228
    %v1230 = vadd.f32 %v1226, %v1229
    %v1231 = vmul.f32 %v1165, %v1165
    %v1232 = vsel %vm1222, %v1231, 0.0
    %1233 = vadd.xlane.f32.xlu0 %v1232
    %v1234 = vpop.xlane.xlu0 %1233
    %v1235 = vadd.f32 %v1234, 0.0
    %v1236 = vmul.f32 %v1217, %v1217
    %v1237 = vsel %vm1222, %v1236, 0.0
    %1238 = vadd.xlane.f32.xlu0 %v1237
    %v1239 = vpop.xlane.xlu0 %1238
    %v1240 = vadd.f32 %v1235, %v1239
    %v1241 = vmul.f32 %v1230, 0.03125
    %v1242 = vmul.f32 %v1240, 0.03125
    %v1243 = vmul.f32 %v1241, %v1241
    %v1244 = vsub.f32 %v1242, %v1243
    %v1245 = vadd.f32 %v1244, 1e-05
    %v1246 = vrsqrt.pop %v1245
    %v1247 = vmul.f32 %v1101, %v1246
    %v1248 = vmul.f32 %v1241, %v1247
    %v1249 = vsub.f32 %v1103, %v1248
    %1251 = vset.pattern.permute.xlu0 0
    %1252 = vperm.xlu0 %1251, %v1247
    %v1253 = vpop.permute.xlu0 %1252
    %v1255 = vmul.f32 %v1165, %v1253
    %1257 = vset.pattern.permute.xlu0 0
    %1258 = vperm.xlu0 %1257, %v1249
    %v1259 = vpop.permute.xlu0 %1258
    %v1261 = vadd.f32 %v1255, %v1259
    %v1262 = vmax.f32 %v1261, 0.0
    %v1263 = vmul.f32 %v1217, %v1253
    %v1264 = vadd.f32 %v1263, %v1259
    %v1265 = vmax.f32 %v1264, 0.0
    %v1266 = vpack.c.bf16 %v1262, %v1262
    %1268 = vset.pattern.permute.xlu0 0
    %1269 = vperm.xlu0 %1268, %v1105
    %v1270 = vpop.permute.xlu0 %1269
    %v1273 = vsel %vm332, %v1097, 0
    %v1276 = vsel %vm186, %v1266, 0
    %1278 = vmatprep.subr.bf16.mxu0 0
    %1279 = vmatpush1.bf16.msra.mxu0 %v1276
    %1280 = vmatprep.subr.bf16.mxu0 0
    %1281 = vmatpush1.bf16.msra.mxu0 0
    %1282 = vmatprep.subr.bf16.mxu0 0
    %1283 = vmatpush1.bf16.msra.mxu0 0
    %1284 = vmatprep.subr.bf16.mxu0 0
    %1285 = vmatpush1.bf16.msra.mxu0 0
    %1286 = vmatprep.subr.bf16.mxu0 0
    %1287 = vmatpush1.bf16.msra.mxu0 0
    %1288 = vmatprep.subr.bf16.mxu0 0
    %1289 = vmatpush1.bf16.msra.mxu0 0
    %1290 = vmatprep.subr.bf16.mxu0 0
    %1291 = vmatpush1.bf16.msra.mxu0 0
    %1292 = vmatprep.subr.bf16.mxu0 0
    %1293 = vmatpush1.bf16.msra.mxu0 0
    %1294 = vmatprep.subr.bf16.mxu0 0
    %1295 = vmatpush1.bf16.msra.mxu0 0
    %1296 = vmatprep.subr.bf16.mxu0 0
    %1297 = vmatpush1.bf16.msra.mxu0 0
    %1298 = vmatprep.subr.bf16.mxu0 0
    %1299 = vmatpush1.bf16.msra.mxu0 0
    %1300 = vmatprep.subr.bf16.mxu0 0
    %1301 = vmatpush1.bf16.msra.mxu0 0
    %1302 = vmatprep.subr.bf16.mxu0 0
    %1303 = vmatpush1.bf16.msra.mxu0 0
    %1304 = vmatprep.subr.bf16.mxu0 0
    %1305 = vmatpush1.bf16.msra.mxu0 0
    %1306 = vmatprep.subr.bf16.mxu0 0
    %1307 = vmatpush1.bf16.msra.mxu0 0
    %1308 = vmatprep.subr.bf16.mxu0 0
    %1309 = vmatpush1.bf16.msra.mxu0 0
    %1310 = vmatprep.mubr.bf16.mxu0 0
    %1311 = vmatmul.mubr.bf16.gmra.mrb[0].mxu0 %v1273
    %v1312 = vpop.f32.mrb[0].mxu0
    %v1313 = vadd.f32 %v1270, %v1312
    %v1314 = vpop.f32.mrb[0].mxu0
    %v1315 = vpop.f32.mrb[0].mxu0
    %v1316 = vpop.f32.mrb[0].mxu0
    %1317 = vdwg.mxu0
    %v1318 = vpack.c.bf16 %v1265, %v1265
    %v1320 = vsel %vm186, %v1318, 0
    %1322 = vmatprep.subr.bf16.mxu0 0
    %1323 = vmatpush1.bf16.msra.mxu0 %v1320
    %1324 = vmatprep.subr.bf16.mxu0 0
    %1325 = vmatpush1.bf16.msra.mxu0 0
    %1326 = vmatprep.subr.bf16.mxu0 0
    %1327 = vmatpush1.bf16.msra.mxu0 0
    %1328 = vmatprep.subr.bf16.mxu0 0
    %1329 = vmatpush1.bf16.msra.mxu0 0
    %1330 = vmatprep.subr.bf16.mxu0 0
    %1331 = vmatpush1.bf16.msra.mxu0 0
    %1332 = vmatprep.subr.bf16.mxu0 0
    %1333 = vmatpush1.bf16.msra.mxu0 0
    %1334 = vmatprep.subr.bf16.mxu0 0
    %1335 = vmatpush1.bf16.msra.mxu0 0
    %1336 = vmatprep.subr.bf16.mxu0 0
    %1337 = vmatpush1.bf16.msra.mxu0 0
    %1338 = vmatprep.subr.bf16.mxu0 0
    %1339 = vmatpush1.bf16.msra.mxu0 0
    %1340 = vmatprep.subr.bf16.mxu0 0
    %1341 = vmatpush1.bf16.msra.mxu0 0
    %1342 = vmatprep.subr.bf16.mxu0 0
    %1343 = vmatpush1.bf16.msra.mxu0 0
    %1344 = vmatprep.subr.bf16.mxu0 0
    %1345 = vmatpush1.bf16.msra.mxu0 0
    %1346 = vmatprep.subr.bf16.mxu0 0
    %1347 = vmatpush1.bf16.msra.mxu0 0
    %1348 = vmatprep.subr.bf16.mxu0 0
    %1349 = vmatpush1.bf16.msra.mxu0 0
    %1350 = vmatprep.subr.bf16.mxu0 0
    %1351 = vmatpush1.bf16.msra.mxu0 0
    %1352 = vmatprep.subr.bf16.mxu0 0
    %1353 = vmatpush1.bf16.msra.mxu0 0
    %1354 = vmatprep.mubr.bf16.mxu0 0
    %1355 = vmatmul.mubr.bf16.gmra.mrb[0].mxu0 %v1273
    %v1356 = vpop.f32.mrb[0].mxu0
    %v1357 = vadd.f32 %v1270, %v1356
    %v1358 = vpop.f32.mrb[0].mxu0
    %v1359 = vpop.f32.mrb[0].mxu0
    %v1360 = vpop.f32.mrb[0].mxu0
    %1361 = vdwg.mxu0
    %v1362 = vsel %vm1222, %v1313, 0.0
    %1363 = vadd.xlane.f32.xlu0 %v1362
    %v1364 = vpop.xlane.xlu0 %1363
    %v1365 = vadd.f32 %v1364, 0.0
    %v1366 = vsel %vm1222, %v1357, 0.0
    %1367 = vadd.xlane.f32.xlu0 %v1366
    %v1368 = vpop.xlane.xlu0 %1367
    %v1369 = vadd.f32 %v1365, %v1368
    %v1370 = vmul.f32 %v1313, %v1313
    %v1371 = vsel %vm1222, %v1370, 0.0
    %1372 = vadd.xlane.f32.xlu0 %v1371
    %v1373 = vpop.xlane.xlu0 %1372
    %v1374 = vadd.f32 %v1373, 0.0
    %v1375 = vmul.f32 %v1357, %v1357
    %v1376 = vsel %vm1222, %v1375, 0.0
    %1377 = vadd.xlane.f32.xlu0 %v1376
    %v1378 = vpop.xlane.xlu0 %1377
    %v1379 = vadd.f32 %v1374, %v1378
    %v1380 = vmul.f32 %v1369, 0.03125
    %v1381 = vmul.f32 %v1379, 0.03125
    %v1382 = vmul.f32 %v1380, %v1380
    %v1383 = vsub.f32 %v1381, %v1382
    %v1384 = vadd.f32 %v1383, 1e-05
    %v1385 = vrsqrt.pop %v1384
    %v1386 = vmul.f32 %v1107, %v1385
    %v1387 = vmul.f32 %v1380, %v1386
    %v1388 = vsub.f32 %v1109, %v1387
    %1390 = vset.pattern.permute.xlu0 0
    %1391 = vperm.xlu0 %1390, %v1386
    %v1392 = vpop.permute.xlu0 %1391
    %v1394 = vmul.f32 %v1313, %v1392
    %1396 = vset.pattern.permute.xlu0 0
    %1397 = vperm.xlu0 %1396, %v1388
    %v1398 = vpop.permute.xlu0 %1397
    %v1400 = vadd.f32 %v1394, %v1398
    %v1401 = vadd.f32 %v1400, %v1112
    %v1402 = vmax.f32 %v1401, 0.0
    %v1403 = vmul.f32 %v1357, %v1392
    %v1404 = vadd.f32 %v1403, %v1398
    %v1405 = vadd.f32 %v1404, %v1172
    %v1406 = vmax.f32 %v1405, 0.0
    %1407 = vst.msk [vmem:[#allocation3] sm:$0xff] %vm1222, %v1402
    %1409 = vrot.lane.b32.xlu0 %v1406, 16
    %v1410 = vpop.permute.xlu0 %1409
    %vm1412 = vcmask 261248
    %1413 = vst.msk [vmem:[#allocation3] sm:$0xff] %vm1412, %v1410
    // Predicated region
    $region46: #{tpu_custom_call.1} parent=1 // pred_check
      _
    $region47: #{tpu_custom_call.1} parent=1 // pred_check_branch
      %1415 = sbr.rel (0) target = $region49
    $region48: #{tpu_custom_call.1} parent=1 // pred_region
      %s1417 = ssub.s32 128, 128
      %1418 = vsyncadd [#allocation4], %s1417
      %s1420 = sshll.u32 [#allocation3], 4
      %s1421 = int_to_ptr.vmem [resolvable:$true] %s1420
      %1423 = dma.vmem_to_hbm [thread:$0]  %s1421, 128, %s11, [#allocation4]
    $region49: #{tpu_custom_call.1} parent=1 // pred_fallthru
      _
    // Predicated region
    $region50: #{tpu_custom_call.1} parent=1 // pred_check
      _
    $region51: #{tpu_custom_call.1} parent=1 // pred_check_branch
      %1425 = sbr.rel (0) target = $region53
    $region52: #{tpu_custom_call.1} parent=1 // pred_region
      %1426 = dma.done [#allocation4], 128
    $region53: #{tpu_custom_call.1} parent=1 // pred_fallthru
      _
    %1427 = vsyncpa [#allocation4], 1

</llo_original>
